<compile_context>
chip_gen: v7x
topology: tpu7x:2x2x1
jax: 0.10.0
libtpu: 0.0.40
codegen_flags: <defaults>
</compile_context>

<pallas_src>
import functools

import jax
import jax.numpy as jnp
from jax.experimental import pallas as pl
from jax.experimental.pallas import tpu as pltpu


# ---------------------------------------------------------------------------
# Fused Pallas kernel: embedding + stacked RNN layers + classifier head.
# ---------------------------------------------------------------------------
def fused_rnn_kernel(*refs, seq_len, batch, num_layers, n_clf, vocab_pad):
    """refs = [ids,                       # (S*B, 1) int32, time-major token ids
               t0,                        # (V_pad, H0)  embed @ Whx0 + (bhx0+bhh0)
               (h0_l, whh_l)    * L,
               (wcomb_l, b_in_l) * (L-1), # Wxh_{l-1} @ Whx_l , fused bias
               wxh_last, bxh_last,        # last layer's output projection
               (w_clf, b_clf)   * n_clf,
               logits_out]                # (B, num_classes padded to 128)
    """
    L, S, B = num_layers, seq_len, batch
    n_in = 2 + 2 * L + 2 * (L - 1) + 2 + 2 * n_clf
    in_refs = refs[:n_in]
    o_ref = refs[n_in]

    p = 0
    ids_ref = in_refs[p]; p += 1
    t0_ref = in_refs[p]; p += 1
    h0_refs, whh_refs = [], []
    for _ in range(L):
        h0_refs.append(in_refs[p]); whh_refs.append(in_refs[p + 1]); p += 2
    wcomb_refs, bin_refs = [None], [None]
    for _ in range(L - 1):
        wcomb_refs.append(in_refs[p]); bin_refs.append(in_refs[p + 1]); p += 2
    wxh_ref, bxh_ref = in_refs[p], in_refs[p + 1]; p += 2
    clf_refs = in_refs[p:p + 2 * n_clf]

    # --- Embedding lookup fused with layer 0's hoisted input projection:
    # xp0 = one_hot(ids) @ T0 (one batched MXU pass over all timesteps; the
    # layer-0 biases are folded into T0 since each one-hot row sums to 1).
    ids = ids_ref[...]                                          # (S*B, 1) int32
    vocab_iota = jax.lax.broadcasted_iota(jnp.int32, (S * B, vocab_pad), 1)
    one_hot = (ids == vocab_iota).astype(jnp.float32)           # (S*B, V_pad)
    xp0 = jnp.dot(one_hot, t0_ref[...],
                  preferred_element_type=jnp.float32)           # (S*B, H0)

    # Load weights / state once; hoist bias broadcasts out of the recurrence.
    whh = [whh_refs[l][...] for l in range(L)]
    wcomb = [None] + [wcomb_refs[l][...] for l in range(1, L)]
    bin_bc = [None] + [
        jnp.broadcast_to(bin_refs[l][...], (B, bin_refs[l].shape[-1]))
        for l in range(1, L)]
    h = [h0_refs[l][...] for l in range(L)]

    # --- Wavefront recurrence: layer l at wavefront step s processes timestep
    # t = s - l using layer l-1's hidden state from the previous wavefront step
    # (exactly the value after layer l-1 processed timestep t), so the per-step
    # dependent matmul+tanh chains of the L layers interleave on the MXU/EUP.
    # No per-step scratch stores: h_t never leaves vregs.
    # TODO(synk): for seq_len >~ 32-64 replace the full Python unroll with a
    # chunked lax.fori_loop to bound vreg live ranges (spill avoidance).
    for s in range(S + L - 1):
        new_h = list(h)
        for l in range(L):
            t = s - l
            if 0 <= t < S:
                if l == 0:
                    inp = xp0[t * B:(t + 1) * B, :]
                else:
                    inp = (jnp.dot(h[l - 1], wcomb[l],
                                   preferred_element_type=jnp.float32)
                           + bin_bc[l])
                new_h[l] = jnp.tanh(
                    jnp.dot(h[l], whh[l],
                            preferred_element_type=jnp.float32) + inp)
        h = new_h

    # Last layer's output projection, final timestep only (the only y the
    # classifier consumes in the reference model).
    out = (jnp.dot(h[L - 1], wxh_ref[...], preferred_element_type=jnp.float32)
           + bxh_ref[...])

    # Fused classifier head: Linear+ReLU blocks, final Linear (class dim padded
    # to 128 lanes by the wrapper -> lane-dense final store, no vst.msk).
    for j in range(n_clf):
        w_ref, b_ref = clf_refs[2 * j], clf_refs[2 * j + 1]
        out = (jnp.dot(out, w_ref[...], preferred_element_type=jnp.float32)
               + b_ref[...])
        if j < n_clf - 1:
            out = jnp.maximum(out, 0.0)

    o_ref[...] = out.astype(o_ref.dtype)


# ---------------------------------------------------------------------------
# Parameter construction (matches nn.Linear / nn.Embedding defaults)
# ---------------------------------------------------------------------------
def linear_params(key, in_dim, out_dim):
    # nn.Linear default init: uniform(-1/sqrt(fan_in), 1/sqrt(fan_in))
    kw, kb = jax.random.split(key)
    bound = 1.0 / jnp.sqrt(jnp.float32(in_dim))
    w = jax.random.uniform(kw, (in_dim, out_dim), jnp.float32, -bound, bound)
    b = jax.random.uniform(kb, (1, out_dim), jnp.float32, -bound, bound)
    return w, b


def build_params(key, cfg):
    num_vocab = 2 + cfg["dataset"]["num_vocab"]
    embed_dim = cfg["model"]["embed_dim"]
    h_dims = cfg["model"]["h_dim"]
    x_dims = cfg["model"]["x_dim"]
    clf_dims = cfg["model"]["clf_dim"]
    num_classes = cfg["dataset"]["num_classes"]
    num_layers = cfg["model"]["num_layers"]

    keys = jax.random.split(key, 2 + 3 * num_layers + len(clf_dims) + 1)
    ki = iter(keys)

    params = {}
    params["embed"] = jax.random.normal(next(ki), (num_vocab, embed_dim),
                                        jnp.float32)

    cells = []
    for i in range(num_layers):
        h_dim = h_dims[i]
        inp_x_dim, out_x_dim = x_dims[i], x_dims[i + 1]
        whh, bhh = linear_params(next(ki), h_dim, h_dim)
        whx, bhx = linear_params(next(ki), inp_x_dim, h_dim)
        wxh, bxh = linear_params(next(ki), h_dim, out_x_dim)
        cells.append((whh, bhh, whx, bhx, wxh, bxh))
    params["cells"] = cells

    # TODO(synk): the torch reference re-creates the classifier nn.Linear layers
    # (fresh random weights) inside every forward call; here they are persistent.
    clf = []
    for i in range(len(clf_dims) - 1):
        clf.append(linear_params(next(ki), clf_dims[i], clf_dims[i + 1]))
    clf.append(linear_params(next(ki), clf_dims[-1], num_classes))
    params["clf"] = clf
    return params


# ---------------------------------------------------------------------------
# Forward
# ---------------------------------------------------------------------------
def rnn_model_forward(params, X, cfg, hidden_key):
    """X: (B, seq_len) int32 token ids -> logits (B, num_classes)."""
    B, S = X.shape
    h_dims = cfg["model"]["h_dim"]
    num_layers = cfg["model"]["num_layers"]
    num_classes = cfg["dataset"]["num_classes"]
    LANE = 128

    # Pad batch to a multiple of 8 sublanes (rows are independent end-to-end;
    # padded rows carry garbage and are sliced off at the end).
    B_pad = max(8, ((B + 7) // 8) * 8)

    embed = params["embed"]                       # (V, E)
    V = embed.shape[0]
    V_pad = max(8, ((V + 7) // 8) * 8)
    cells = params["cells"]

    # --- Offline weight fusions (O(params), independent of batch/seq).
    whh0, bhh0, whx0, bhx0, _, _ = cells[0]
    t0 = embed @ whx0 + (bhx0 + bhh0)             # (V, H0): embed+proj+biases
    t0 = jnp.pad(t0, ((0, V_pad - V), (0, 0)))

    wcombs, b_ins = [], []
    for l in range(1, num_layers):
        whh_l, bhh_l, whx_l, bhx_l, _, _ = cells[l]
        _, _, _, _, wxh_prev, bxh_prev = cells[l - 1]
        wcombs.append(wxh_prev @ whx_l)                       # (H_{l-1}, H_l)
        b_ins.append(bxh_prev @ whx_l + bhx_l + bhh_l)        # (1, H_l)
    wxh_last, bxh_last = cells[-1][4], cells[-1][5]

    # Classifier: pad the final Linear's class dim to 128 for a lane-dense store.
    clf = list(params["clf"])
    nc_pad = ((num_classes + LANE - 1) // LANE) * LANE
    w_last, b_last = clf[-1]
    w_last_p = jnp.pad(w_last, ((0, 0), (0, nc_pad - num_classes)))
    b_last_p = jnp.pad(b_last, ((0, 0), (0, nc_pad - num_classes)))

    # Token ids, time-major, batch padded (tiny int32 glue; no (S,B,E) tensor
    # ever leaves HBM — the embedding gather happens inside the kernel).
    ids = jnp.pad(X.astype(jnp.int32), ((0, B_pad - B), (0, 0)))   # (B_pad, S)
    ids_flat = ids.T.reshape(S * B_pad, 1)

    # init_hidden: torch draws kaiming_uniform_ state each forward; here we draw
    # deterministically from a fixed key.
    # TODO(synk): torch re-randomizes hidden state per forward call; semantics
    # matched up to deterministic RNG choice.
    hkeys = jax.random.split(hidden_key, num_layers)
    h0s = [
        jax.random.uniform(hkeys[i], (B_pad, h_dims[i]), jnp.float32,
                           -jnp.sqrt(6.0 / h_dims[i]),
                           jnp.sqrt(6.0 / h_dims[i]))
        for i in range(num_layers)
    ]

    inputs = [ids_flat, t0]
    for l in range(num_layers):
        inputs += [h0s[l], cells[l][0]]          # h0, whh (pre-transposed)
    for l in range(num_layers - 1):
        inputs += [wcombs[l], b_ins[l]]
    inputs += [wxh_last, bxh_last]
    for j, (w, b) in enumerate(clf):
        if j == len(clf) - 1:
            inputs += [w_last_p, b_last_p]
        else:
            inputs += [w, b]

    n_clf = len(clf)
    kernel = functools.partial(
        fused_rnn_kernel, seq_len=S, batch=B_pad,
        num_layers=num_layers, n_clf=n_clf, vocab_pad=V_pad)

    # NOTE: gridless single-TC call is right at this size. If batch grows, add a
    # leading grid axis over batch tiles with dimension_semantics=("parallel",)
    # to shard across v7x's two TensorCores; if S*B*H grows toward the VMEM
    # budget, chunk the sequence instead of keeping everything resident.
    logits = pl.pallas_call(
        kernel,
        out_shape=jax.ShapeDtypeStruct((B_pad, nc_pad), jnp.float32),
        in_specs=[pl.BlockSpec(memory_space=pltpu.MemorySpace.VMEM)]
                 * len(inputs),
        out_specs=pl.BlockSpec(memory_space=pltpu.MemorySpace.VMEM),
        compiler_params=pltpu.CompilerParams(
            vmem_limit_bytes=32 * 1024 * 1024),
    )(*inputs)
    return logits[:B, :num_classes]


# ---------------------------------------------------------------------------
if __name__ == "__main__":
    cfg = {
        "dataset": {"seq_len": 8, "num_classes": 4, "num_vocab": 10},
        "model": {
            "num_layers": 2,
            "h_dim": [32, 32],
            "x_dim": [16, 32, 32],   # x_dim[0] == embed_dim
            "clf_dim": [32, 16],     # clf_dim[0] == x_dim[-1]
            "embed_dim": 16,
        },
    }

    key = jax.random.PRNGKey(0)
    k_params, k_hidden, k_x = jax.random.split(key, 3)

    params = build_params(k_params, cfg)

    B = 2
    S = cfg["dataset"]["seq_len"]
    num_vocab = 2 + cfg["dataset"]["num_vocab"]
    X = jax.random.randint(k_x, (B, S), 0, num_vocab, dtype=jnp.int32)

    logits = rnn_model_forward(params, X, cfg, k_hidden)
    jax.block_until_ready(logits)
    assert logits.shape == (B, cfg["dataset"]["num_classes"])
    print("KERNEL_OK")
</pallas_src>

<mosaic_0001>
module attributes {stable_mosaic.version = 11 : i64} {
  func.func @fused_rnn_kernel(%arg0: memref<64x1xi32, #tpu.memory_space<vmem>>, %arg1: memref<16x32xf32, #tpu.memory_space<vmem>>, %arg2: memref<8x32xf32, #tpu.memory_space<vmem>>, %arg3: memref<32x32xf32, #tpu.memory_space<vmem>>, %arg4: memref<8x32xf32, #tpu.memory_space<vmem>>, %arg5: memref<32x32xf32, #tpu.memory_space<vmem>>, %arg6: memref<32x32xf32, #tpu.memory_space<vmem>>, %arg7: memref<1x32xf32, #tpu.memory_space<vmem>>, %arg8: memref<32x32xf32, #tpu.memory_space<vmem>>, %arg9: memref<1x32xf32, #tpu.memory_space<vmem>>, %arg10: memref<32x16xf32, #tpu.memory_space<vmem>>, %arg11: memref<1x16xf32, #tpu.memory_space<vmem>>, %arg12: memref<16x128xf32, #tpu.memory_space<vmem>>, %arg13: memref<1x128xf32, #tpu.memory_space<vmem>>, %arg14: memref<8x128xf32, #tpu.memory_space<vmem>>) attributes {dimension_semantics = [], scalar_prefetch = 0 : i64, scratch_operands = 0 : i64, tpu.core_type = #tpu.core_type<tc>} {
    %c0 = arith.constant 0 : index
    %c0_0 = arith.constant 0 : index
    %0 = vector.load %arg0[%c0, %c0_0] : memref<64x1xi32, #tpu.memory_space<vmem>>, vector<64x1xi32>
    %1 = tpu.iota {dimensions = array<i32: 1>} : vector<64x16xi32>
    %2 = vector.broadcast %0 : vector<64x1xi32> to vector<64x16xi32>
    %3 = arith.cmpi eq, %2, %1 : vector<64x16xi32>
    %4 = arith.extui %3 : vector<64x16xi1> to vector<64x16xi32>
    %5 = arith.sitofp %4 : vector<64x16xi32> to vector<64x16xf32>
    %c0_1 = arith.constant 0 : index
    %c0_2 = arith.constant 0 : index
    %6 = vector.load %arg1[%c0_1, %c0_2] : memref<16x32xf32, #tpu.memory_space<vmem>>, vector<16x32xf32>
    %cst = arith.constant dense<0.000000e+00> : vector<64x32xf32>
    %7 = tpu.matmul %5, %6, %cst {dimension_numbers = #tpu.dot_dimension_numbers<[1], [0], [0], [1], [0, 0, 1, 1], [], []>} : vector<64x16xf32>, vector<16x32xf32>, vector<64x32xf32> -> vector<64x32xf32>
    %c0_3 = arith.constant 0 : index
    %c0_4 = arith.constant 0 : index
    %8 = vector.load %arg3[%c0_3, %c0_4] : memref<32x32xf32, #tpu.memory_space<vmem>>, vector<32x32xf32>
    %c0_5 = arith.constant 0 : index
    %c0_6 = arith.constant 0 : index
    %9 = vector.load %arg5[%c0_5, %c0_6] : memref<32x32xf32, #tpu.memory_space<vmem>>, vector<32x32xf32>
    %c0_7 = arith.constant 0 : index
    %c0_8 = arith.constant 0 : index
    %10 = vector.load %arg6[%c0_7, %c0_8] : memref<32x32xf32, #tpu.memory_space<vmem>>, vector<32x32xf32>
    %c0_9 = arith.constant 0 : index
    %c0_10 = arith.constant 0 : index
    %11 = vector.load %arg7[%c0_9, %c0_10] : memref<1x32xf32, #tpu.memory_space<vmem>>, vector<1x32xf32>
    %12 = vector.shape_cast %11 : vector<1x32xf32> to vector<1x32xf32>
    %13 = vector.broadcast %12 : vector<1x32xf32> to vector<8x32xf32>
    %c0_11 = arith.constant 0 : index
    %c0_12 = arith.constant 0 : index
    %14 = vector.load %arg2[%c0_11, %c0_12] : memref<8x32xf32, #tpu.memory_space<vmem>>, vector<8x32xf32>
    %c0_13 = arith.constant 0 : index
    %c0_14 = arith.constant 0 : index
    %15 = vector.load %arg4[%c0_13, %c0_14] : memref<8x32xf32, #tpu.memory_space<vmem>>, vector<8x32xf32>
    %16 = vector.extract_strided_slice %7 {offsets = [0, 0], sizes = [8, 32], strides = [1, 1]} : vector<64x32xf32> to vector<8x32xf32>
    %cst_15 = arith.constant dense<0.000000e+00> : vector<8x32xf32>
    %17 = tpu.matmul %14, %8, %cst_15 {dimension_numbers = #tpu.dot_dimension_numbers<[1], [0], [0], [1], [0, 0, 1, 1], [], []>} : vector<8x32xf32>, vector<32x32xf32>, vector<8x32xf32> -> vector<8x32xf32>
    %18 = arith.addf %17, %16 : vector<8x32xf32>
    %19 = math.tanh %18 : vector<8x32xf32>
    %20 = vector.extract_strided_slice %7 {offsets = [8, 0], sizes = [8, 32], strides = [1, 1]} : vector<64x32xf32> to vector<8x32xf32>
    %cst_16 = arith.constant dense<0.000000e+00> : vector<8x32xf32>
    %21 = tpu.matmul %19, %8, %cst_16 {dimension_numbers = #tpu.dot_dimension_numbers<[1], [0], [0], [1], [0, 0, 1, 1], [], []>} : vector<8x32xf32>, vector<32x32xf32>, vector<8x32xf32> -> vector<8x32xf32>
    %22 = arith.addf %21, %20 : vector<8x32xf32>
    %23 = math.tanh %22 : vector<8x32xf32>
    %cst_17 = arith.constant dense<0.000000e+00> : vector<8x32xf32>
    %24 = tpu.matmul %19, %10, %cst_17 {dimension_numbers = #tpu.dot_dimension_numbers<[1], [0], [0], [1], [0, 0, 1, 1], [], []>} : vector<8x32xf32>, vector<32x32xf32>, vector<8x32xf32> -> vector<8x32xf32>
    %25 = arith.addf %24, %13 : vector<8x32xf32>
    %cst_18 = arith.constant dense<0.000000e+00> : vector<8x32xf32>
    %26 = tpu.matmul %15, %9, %cst_18 {dimension_numbers = #tpu.dot_dimension_numbers<[1], [0], [0], [1], [0, 0, 1, 1], [], []>} : vector<8x32xf32>, vector<32x32xf32>, vector<8x32xf32> -> vector<8x32xf32>
    %27 = arith.addf %26, %25 : vector<8x32xf32>
    %28 = math.tanh %27 : vector<8x32xf32>
    %29 = vector.extract_strided_slice %7 {offsets = [16, 0], sizes = [8, 32], strides = [1, 1]} : vector<64x32xf32> to vector<8x32xf32>
    %cst_19 = arith.constant dense<0.000000e+00> : vector<8x32xf32>
    %30 = tpu.matmul %23, %8, %cst_19 {dimension_numbers = #tpu.dot_dimension_numbers<[1], [0], [0], [1], [0, 0, 1, 1], [], []>} : vector<8x32xf32>, vector<32x32xf32>, vector<8x32xf32> -> vector<8x32xf32>
    %31 = arith.addf %30, %29 : vector<8x32xf32>
    %32 = math.tanh %31 : vector<8x32xf32>
    %cst_20 = arith.constant dense<0.000000e+00> : vector<8x32xf32>
    %33 = tpu.matmul %23, %10, %cst_20 {dimension_numbers = #tpu.dot_dimension_numbers<[1], [0], [0], [1], [0, 0, 1, 1], [], []>} : vector<8x32xf32>, vector<32x32xf32>, vector<8x32xf32> -> vector<8x32xf32>
    %34 = arith.addf %33, %13 : vector<8x32xf32>
    %cst_21 = arith.constant dense<0.000000e+00> : vector<8x32xf32>
    %35 = tpu.matmul %28, %9, %cst_21 {dimension_numbers = #tpu.dot_dimension_numbers<[1], [0], [0], [1], [0, 0, 1, 1], [], []>} : vector<8x32xf32>, vector<32x32xf32>, vector<8x32xf32> -> vector<8x32xf32>
    %36 = arith.addf %35, %34 : vector<8x32xf32>
    %37 = math.tanh %36 : vector<8x32xf32>
    %38 = vector.extract_strided_slice %7 {offsets = [24, 0], sizes = [8, 32], strides = [1, 1]} : vector<64x32xf32> to vector<8x32xf32>
    %cst_22 = arith.constant dense<0.000000e+00> : vector<8x32xf32>
    %39 = tpu.matmul %32, %8, %cst_22 {dimension_numbers = #tpu.dot_dimension_numbers<[1], [0], [0], [1], [0, 0, 1, 1], [], []>} : vector<8x32xf32>, vector<32x32xf32>, vector<8x32xf32> -> vector<8x32xf32>
    %40 = arith.addf %39, %38 : vector<8x32xf32>
    %41 = math.tanh %40 : vector<8x32xf32>
    %cst_23 = arith.constant dense<0.000000e+00> : vector<8x32xf32>
    %42 = tpu.matmul %32, %10, %cst_23 {dimension_numbers = #tpu.dot_dimension_numbers<[1], [0], [0], [1], [0, 0, 1, 1], [], []>} : vector<8x32xf32>, vector<32x32xf32>, vector<8x32xf32> -> vector<8x32xf32>
    %43 = arith.addf %42, %13 : vector<8x32xf32>
    %cst_24 = arith.constant dense<0.000000e+00> : vector<8x32xf32>
    %44 = tpu.matmul %37, %9, %cst_24 {dimension_numbers = #tpu.dot_dimension_numbers<[1], [0], [0], [1], [0, 0, 1, 1], [], []>} : vector<8x32xf32>, vector<32x32xf32>, vector<8x32xf32> -> vector<8x32xf32>
    %45 = arith.addf %44, %43 : vector<8x32xf32>
    %46 = math.tanh %45 : vector<8x32xf32>
    %47 = vector.extract_strided_slice %7 {offsets = [32, 0], sizes = [8, 32], strides = [1, 1]} : vector<64x32xf32> to vector<8x32xf32>
    %cst_25 = arith.constant dense<0.000000e+00> : vector<8x32xf32>
    %48 = tpu.matmul %41, %8, %cst_25 {dimension_numbers = #tpu.dot_dimension_numbers<[1], [0], [0], [1], [0, 0, 1, 1], [], []>} : vector<8x32xf32>, vector<32x32xf32>, vector<8x32xf32> -> vector<8x32xf32>
    %49 = arith.addf %48, %47 : vector<8x32xf32>
    %50 = math.tanh %49 : vector<8x32xf32>
    %cst_26 = arith.constant dense<0.000000e+00> : vector<8x32xf32>
    %51 = tpu.matmul %41, %10, %cst_26 {dimension_numbers = #tpu.dot_dimension_numbers<[1], [0], [0], [1], [0, 0, 1, 1], [], []>} : vector<8x32xf32>, vector<32x32xf32>, vector<8x32xf32> -> vector<8x32xf32>
    %52 = arith.addf %51, %13 : vector<8x32xf32>
    %cst_27 = arith.constant dense<0.000000e+00> : vector<8x32xf32>
    %53 = tpu.matmul %46, %9, %cst_27 {dimension_numbers = #tpu.dot_dimension_numbers<[1], [0], [0], [1], [0, 0, 1, 1], [], []>} : vector<8x32xf32>, vector<32x32xf32>, vector<8x32xf32> -> vector<8x32xf32>
    %54 = arith.addf %53, %52 : vector<8x32xf32>
    %55 = math.tanh %54 : vector<8x32xf32>
    %56 = vector.extract_strided_slice %7 {offsets = [40, 0], sizes = [8, 32], strides = [1, 1]} : vector<64x32xf32> to vector<8x32xf32>
    %cst_28 = arith.constant dense<0.000000e+00> : vector<8x32xf32>
    %57 = tpu.matmul %50, %8, %cst_28 {dimension_numbers = #tpu.dot_dimension_numbers<[1], [0], [0], [1], [0, 0, 1, 1], [], []>} : vector<8x32xf32>, vector<32x32xf32>, vector<8x32xf32> -> vector<8x32xf32>
    %58 = arith.addf %57, %56 : vector<8x32xf32>
    %59 = math.tanh %58 : vector<8x32xf32>
    %cst_29 = arith.constant dense<0.000000e+00> : vector<8x32xf32>
    %60 = tpu.matmul %50, %10, %cst_29 {dimension_numbers = #tpu.dot_dimension_numbers<[1], [0], [0], [1], [0, 0, 1, 1], [], []>} : vector<8x32xf32>, vector<32x32xf32>, vector<8x32xf32> -> vector<8x32xf32>
    %61 = arith.addf %60, %13 : vector<8x32xf32>
    %cst_30 = arith.constant dense<0.000000e+00> : vector<8x32xf32>
    %62 = tpu.matmul %55, %9, %cst_30 {dimension_numbers = #tpu.dot_dimension_numbers<[1], [0], [0], [1], [0, 0, 1, 1], [], []>} : vector<8x32xf32>, vector<32x32xf32>, vector<8x32xf32> -> vector<8x32xf32>
    %63 = arith.addf %62, %61 : vector<8x32xf32>
    %64 = math.tanh %63 : vector<8x32xf32>
    %65 = vector.extract_strided_slice %7 {offsets = [48, 0], sizes = [8, 32], strides = [1, 1]} : vector<64x32xf32> to vector<8x32xf32>
    %cst_31 = arith.constant dense<0.000000e+00> : vector<8x32xf32>
    %66 = tpu.matmul %59, %8, %cst_31 {dimension_numbers = #tpu.dot_dimension_numbers<[1], [0], [0], [1], [0, 0, 1, 1], [], []>} : vector<8x32xf32>, vector<32x32xf32>, vector<8x32xf32> -> vector<8x32xf32>
    %67 = arith.addf %66, %65 : vector<8x32xf32>
    %68 = math.tanh %67 : vector<8x32xf32>
    %cst_32 = arith.constant dense<0.000000e+00> : vector<8x32xf32>
    %69 = tpu.matmul %59, %10, %cst_32 {dimension_numbers = #tpu.dot_dimension_numbers<[1], [0], [0], [1], [0, 0, 1, 1], [], []>} : vector<8x32xf32>, vector<32x32xf32>, vector<8x32xf32> -> vector<8x32xf32>
    %70 = arith.addf %69, %13 : vector<8x32xf32>
    %cst_33 = arith.constant dense<0.000000e+00> : vector<8x32xf32>
    %71 = tpu.matmul %64, %9, %cst_33 {dimension_numbers = #tpu.dot_dimension_numbers<[1], [0], [0], [1], [0, 0, 1, 1], [], []>} : vector<8x32xf32>, vector<32x32xf32>, vector<8x32xf32> -> vector<8x32xf32>
    %72 = arith.addf %71, %70 : vector<8x32xf32>
    %73 = math.tanh %72 : vector<8x32xf32>
    %74 = vector.extract_strided_slice %7 {offsets = [56, 0], sizes = [8, 32], strides = [1, 1]} : vector<64x32xf32> to vector<8x32xf32>
    %cst_34 = arith.constant dense<0.000000e+00> : vector<8x32xf32>
    %75 = tpu.matmul %68, %8, %cst_34 {dimension_numbers = #tpu.dot_dimension_numbers<[1], [0], [0], [1], [0, 0, 1, 1], [], []>} : vector<8x32xf32>, vector<32x32xf32>, vector<8x32xf32> -> vector<8x32xf32>
    %76 = arith.addf %75, %74 : vector<8x32xf32>
    %77 = math.tanh %76 : vector<8x32xf32>
    %cst_35 = arith.constant dense<0.000000e+00> : vector<8x32xf32>
    %78 = tpu.matmul %68, %10, %cst_35 {dimension_numbers = #tpu.dot_dimension_numbers<[1], [0], [0], [1], [0, 0, 1, 1], [], []>} : vector<8x32xf32>, vector<32x32xf32>, vector<8x32xf32> -> vector<8x32xf32>
    %79 = arith.addf %78, %13 : vector<8x32xf32>
    %cst_36 = arith.constant dense<0.000000e+00> : vector<8x32xf32>
    %80 = tpu.matmul %73, %9, %cst_36 {dimension_numbers = #tpu.dot_dimension_numbers<[1], [0], [0], [1], [0, 0, 1, 1], [], []>} : vector<8x32xf32>, vector<32x32xf32>, vector<8x32xf32> -> vector<8x32xf32>
    %81 = arith.addf %80, %79 : vector<8x32xf32>
    %82 = math.tanh %81 : vector<8x32xf32>
    %cst_37 = arith.constant dense<0.000000e+00> : vector<8x32xf32>
    %83 = tpu.matmul %77, %10, %cst_37 {dimension_numbers = #tpu.dot_dimension_numbers<[1], [0], [0], [1], [0, 0, 1, 1], [], []>} : vector<8x32xf32>, vector<32x32xf32>, vector<8x32xf32> -> vector<8x32xf32>
    %84 = arith.addf %83, %13 : vector<8x32xf32>
    %cst_38 = arith.constant dense<0.000000e+00> : vector<8x32xf32>
    %85 = tpu.matmul %82, %9, %cst_38 {dimension_numbers = #tpu.dot_dimension_numbers<[1], [0], [0], [1], [0, 0, 1, 1], [], []>} : vector<8x32xf32>, vector<32x32xf32>, vector<8x32xf32> -> vector<8x32xf32>
    %86 = arith.addf %85, %84 : vector<8x32xf32>
    %87 = math.tanh %86 : vector<8x32xf32>
    %c0_39 = arith.constant 0 : index
    %c0_40 = arith.constant 0 : index
    %88 = vector.load %arg8[%c0_39, %c0_40] : memref<32x32xf32, #tpu.memory_space<vmem>>, vector<32x32xf32>
    %cst_41 = arith.constant dense<0.000000e+00> : vector<8x32xf32>
    %89 = tpu.matmul %87, %88, %cst_41 {dimension_numbers = #tpu.dot_dimension_numbers<[1], [0], [0], [1], [0, 0, 1, 1], [], []>} : vector<8x32xf32>, vector<32x32xf32>, vector<8x32xf32> -> vector<8x32xf32>
    %c0_42 = arith.constant 0 : index
    %c0_43 = arith.constant 0 : index
    %90 = vector.load %arg9[%c0_42, %c0_43] : memref<1x32xf32, #tpu.memory_space<vmem>>, vector<1x32xf32>
    %91 = vector.broadcast %90 : vector<1x32xf32> to vector<8x32xf32>
    %92 = arith.addf %89, %91 : vector<8x32xf32>
    %c0_44 = arith.constant 0 : index
    %c0_45 = arith.constant 0 : index
    %93 = vector.load %arg10[%c0_44, %c0_45] : memref<32x16xf32, #tpu.memory_space<vmem>>, vector<32x16xf32>
    %cst_46 = arith.constant dense<0.000000e+00> : vector<8x16xf32>
    %94 = tpu.matmul %92, %93, %cst_46 {dimension_numbers = #tpu.dot_dimension_numbers<[1], [0], [0], [1], [0, 0, 1, 1], [], []>} : vector<8x32xf32>, vector<32x16xf32>, vector<8x16xf32> -> vector<8x16xf32>
    %c0_47 = arith.constant 0 : index
    %c0_48 = arith.constant 0 : index
    %95 = vector.load %arg11[%c0_47, %c0_48] : memref<1x16xf32, #tpu.memory_space<vmem>>, vector<1x16xf32>
    %96 = vector.broadcast %95 : vector<1x16xf32> to vector<8x16xf32>
    %97 = arith.addf %94, %96 : vector<8x16xf32>
    %cst_49 = arith.constant 0.000000e+00 : f32
    %98 = vector.broadcast %cst_49 : f32 to vector<8x16xf32>
    %99 = arith.maximumf %97, %98 : vector<8x16xf32>
    %c0_50 = arith.constant 0 : index
    %c0_51 = arith.constant 0 : index
    %100 = vector.load %arg12[%c0_50, %c0_51] : memref<16x128xf32, #tpu.memory_space<vmem>>, vector<16x128xf32>
    %cst_52 = arith.constant dense<0.000000e+00> : vector<8x128xf32>
    %101 = tpu.matmul %99, %100, %cst_52 {dimension_numbers = #tpu.dot_dimension_numbers<[1], [0], [0], [1], [0, 0, 1, 1], [], []>} : vector<8x16xf32>, vector<16x128xf32>, vector<8x128xf32> -> vector<8x128xf32>
    %c0_53 = arith.constant 0 : index
    %c0_54 = arith.constant 0 : index
    %102 = vector.load %arg13[%c0_53, %c0_54] : memref<1x128xf32, #tpu.memory_space<vmem>>, vector<1x128xf32>
    %103 = vector.broadcast %102 : vector<1x128xf32> to vector<8x128xf32>
    %104 = arith.addf %101, %103 : vector<8x128xf32>
    %c0_55 = arith.constant 0 : index
    %c0_56 = arith.constant 0 : index
    %105 = vector.load %arg14[%c0_55, %c0_56] : memref<8x128xf32, #tpu.memory_space<vmem>>, vector<8x128xf32>
    tpu.vector_store %arg14[%c0_55, %c0_56], %104 {strides = array<i32>} : memref<8x128xf32, #tpu.memory_space<vmem>>, vector<8x128xf32>,
    return
  }
}

</mosaic_0001>

<llo_original>
// kernel: tpu_custom_call.1
$region0: #{tpu_custom_call.1}
  #allocation0 [shape = 'u32[]', space=smem, size = 0x4, offset = 0x4, fixed_abs, tag = 'smem constant byte address 0x4 - core index']
  #allocation1 [shape = 'u32[144,128]{1,0:T(1,128)}', space=vmem, size = 0x12000, scoped, tag = 'internal scratch']
  %s0 = inlined_call_operand.vmem [shape: s32[64,1], index: 0, kind: input, shape index: {}]
  %s1 = inlined_call_operand.hbm [shape: f32[16,32], index: 1, kind: input, shape index: {}]
  %s2 = inlined_call_operand.hbm [shape: f32[8,32], index: 2, kind: input, shape index: {}]
  %s3 = inlined_call_operand.vmem [shape: f32[32,32], index: 3, kind: input, shape index: {}]
  %s4 = inlined_call_operand.hbm [shape: f32[8,32], index: 4, kind: input, shape index: {}]
  %s5 = inlined_call_operand.vmem [shape: f32[32,32], index: 5, kind: input, shape index: {}]
  %s6 = inlined_call_operand.vmem [shape: f32[32,32], index: 6, kind: input, shape index: {}]
  %s7 = inlined_call_operand.vmem [shape: f32[1,32], index: 7, kind: input, shape index: {}]
  %s8 = inlined_call_operand.vmem [shape: f32[32,32], index: 8, kind: input, shape index: {}]
  %s9 = inlined_call_operand.vmem [shape: f32[1,32], index: 9, kind: input, shape index: {}]
  %s10 = inlined_call_operand.vmem [shape: f32[32,16], index: 10, kind: input, shape index: {}]
  %s11 = inlined_call_operand.vmem [shape: f32[1,16], index: 11, kind: input, shape index: {}]
  %s12 = inlined_call_operand.hbm [shape: f32[16,128], index: 12, kind: input, shape index: {}]
  %s13 = inlined_call_operand.vmem [shape: f32[1,128], index: 13, kind: input, shape index: {}]
  %s14 = inlined_call_operand.hbm [shape: f32[8,128], index: 14, kind: output, shape index: {}]
  %s15 = sld [smem:[#allocation0]]
  $region82: #{tpu_custom_call.1} parent=0
    _
  %s17 = ssub.s32 1, %s15
  %s18 = scalar_select 0, %s17, %s15
  $region1: #{tpu_custom_call.1} parent=0
    #allocation2 [shape = 'u8[8192]{0}', space=vmem, size = 0x2000, scoped, tag = 'input window, operand 1, single buffered']
    #allocation3 [shape = 's32[1]{0}', space=sflag, size = 0x4, scoped, tag = 'scoped memory for tpu_custom_call.1']
    #allocation4 [shape = 's32[1]{0}', space=sflag, size = 0x4, scoped, tag = 'scoped memory for tpu_custom_call.1']
    #allocation5 [shape = 'u8[4096]{0}', space=vmem, size = 0x1000, scoped, tag = 'input window, operand 2, single buffered']
    #allocation6 [shape = 's32[1]{0}', space=sflag, size = 0x4, scoped, tag = 'scoped memory for tpu_custom_call.1']
    #allocation7 [shape = 'u8[4096]{0}', space=vmem, size = 0x1000, scoped, tag = 'input window, operand 4, single buffered']
    #allocation8 [shape = 'u8[8192]{0}', space=vmem, size = 0x2000, scoped, tag = 'input window, operand 12, single buffered']
    #allocation9 [shape = 's32[1]{0}', space=sflag, size = 0x4, scoped, tag = 'scoped memory for tpu_custom_call.1']
    #allocation10 [shape = 'u8[4096]{0}', space=vmem, size = 0x1000, scoped, tag = 'output window, operand 0, single buffered']
    %19 = vsyncpa [#allocation3], 0
    %20 = vsyncpa [#allocation6], 0
    %21 = vsyncpa [#allocation9], 0
    %22 = vsyncpa [#allocation4], 0
    // Predicated region
    $region2: #{tpu_custom_call.1} parent=1 // pred_check
      _
    $region3: #{tpu_custom_call.1} parent=1 // pred_check_branch
      %24 = sbr.rel (0) target = $region5
    $region4: #{tpu_custom_call.1} parent=1 // pred_region
      _
    $region5: #{tpu_custom_call.1} parent=1 // pred_fallthru
      _
    // Predicated region
    $region6: #{tpu_custom_call.1} parent=1 // pred_check
      _
    $region7: #{tpu_custom_call.1} parent=1 // pred_check_branch
      %26 = sbr.rel (0) target = $region9
    $region8: #{tpu_custom_call.1} parent=1 // pred_region
      %s28 = ssub.s32 256, 256
      %29 = vsyncadd [#allocation3], %s28
      %s30 = sshll.u32 [#allocation2], 4
      %s31 = int_to_ptr.vmem [resolvable:$true] %s30
      %36 = dma.hbm_to_vmem [thread:$0]  %s1, 256, %s31, [#allocation3], 128, 128, 8
    $region9: #{tpu_custom_call.1} parent=1 // pred_fallthru
      _
    // Predicated region
    $region10: #{tpu_custom_call.1} parent=1 // pred_check
      _
    $region11: #{tpu_custom_call.1} parent=1 // pred_check_branch
      %38 = sbr.rel (0) target = $region13
    $region12: #{tpu_custom_call.1} parent=1 // pred_region
      %s40 = ssub.s32 128, 128
      %41 = vsyncadd [#allocation6], %s40
      %s43 = sshll.u32 [#allocation5], 4
      %s44 = int_to_ptr.vmem [resolvable:$true] %s43
      %46 = dma.hbm_to_vmem [thread:$0]  %s2, 128, %s44, [#allocation6]
    $region13: #{tpu_custom_call.1} parent=1 // pred_fallthru
      _
    // Predicated region
    $region14: #{tpu_custom_call.1} parent=1 // pred_check
      _
    $region15: #{tpu_custom_call.1} parent=1 // pred_check_branch
      %48 = sbr.rel (0) target = $region17
    $region16: #{tpu_custom_call.1} parent=1 // pred_region
      _
    $region17: #{tpu_custom_call.1} parent=1 // pred_fallthru
      _
    // Predicated region
    $region18: #{tpu_custom_call.1} parent=1 // pred_check
      _
    $region19: #{tpu_custom_call.1} parent=1 // pred_check_branch
      %50 = sbr.rel (0) target = $region21
    $region20: #{tpu_custom_call.1} parent=1 // pred_region
      %s52 = ssub.s32 128, 128
      %53 = vsyncadd [#allocation6], %s52
      %s55 = sshll.u32 [#allocation7], 4
      %s56 = int_to_ptr.vmem [resolvable:$true] %s55
      %58 = dma.hbm_to_vmem [thread:$0]  %s4, 128, %s56, [#allocation6]
    $region21: #{tpu_custom_call.1} parent=1 // pred_fallthru
      _
    // Predicated region
    $region22: #{tpu_custom_call.1} parent=1 // pred_check
      _
    $region23: #{tpu_custom_call.1} parent=1 // pred_check_branch
      %60 = sbr.rel (0) target = $region25
    $region24: #{tpu_custom_call.1} parent=1 // pred_region
      _
    $region25: #{tpu_custom_call.1} parent=1 // pred_fallthru
      _
    // Predicated region
    $region26: #{tpu_custom_call.1} parent=1 // pred_check
      _
    $region27: #{tpu_custom_call.1} parent=1 // pred_check_branch
      %62 = sbr.rel (0) target = $region29
    $region28: #{tpu_custom_call.1} parent=1 // pred_region
      _
    $region29: #{tpu_custom_call.1} parent=1 // pred_fallthru
      _
    // Predicated region
    $region30: #{tpu_custom_call.1} parent=1 // pred_check
      _
    $region31: #{tpu_custom_call.1} parent=1 // pred_check_branch
      %64 = sbr.rel (0) target = $region33
    $region32: #{tpu_custom_call.1} parent=1 // pred_region
      _
    $region33: #{tpu_custom_call.1} parent=1 // pred_fallthru
      _
    // Predicated region
    $region34: #{tpu_custom_call.1} parent=1 // pred_check
      _
    $region35: #{tpu_custom_call.1} parent=1 // pred_check_branch
      %66 = sbr.rel (0) target = $region37
    $region36: #{tpu_custom_call.1} parent=1 // pred_region
      _
    $region37: #{tpu_custom_call.1} parent=1 // pred_fallthru
      _
    // Predicated region
    $region38: #{tpu_custom_call.1} parent=1 // pred_check
      _
    $region39: #{tpu_custom_call.1} parent=1 // pred_check_branch
      %68 = sbr.rel (0) target = $region41
    $region40: #{tpu_custom_call.1} parent=1 // pred_region
      _
    $region41: #{tpu_custom_call.1} parent=1 // pred_fallthru
      _
    // Predicated region
    $region42: #{tpu_custom_call.1} parent=1 // pred_check
      _
    $region43: #{tpu_custom_call.1} parent=1 // pred_check_branch
      %70 = sbr.rel (0) target = $region45
    $region44: #{tpu_custom_call.1} parent=1 // pred_region
      _
    $region45: #{tpu_custom_call.1} parent=1 // pred_fallthru
      _
    // Predicated region
    $region46: #{tpu_custom_call.1} parent=1 // pred_check
      _
    $region47: #{tpu_custom_call.1} parent=1 // pred_check_branch
      %72 = sbr.rel (0) target = $region49
    $region48: #{tpu_custom_call.1} parent=1 // pred_region
      _
    $region49: #{tpu_custom_call.1} parent=1 // pred_fallthru
      _
    // Predicated region
    $region50: #{tpu_custom_call.1} parent=1 // pred_check
      _
    $region51: #{tpu_custom_call.1} parent=1 // pred_check_branch
      %74 = sbr.rel (0) target = $region53
    $region52: #{tpu_custom_call.1} parent=1 // pred_region
      %s76 = ssub.s32 256, 256
      %77 = vsyncadd [#allocation9], %s76
      %s78 = sshll.u32 [#allocation8], 4
      %s79 = int_to_ptr.vmem [resolvable:$true] %s78
      %84 = dma.hbm_to_vmem [thread:$0]  %s12, 256, %s79, [#allocation9], 128, 128, 8
    $region53: #{tpu_custom_call.1} parent=1 // pred_fallthru
      _
    // Predicated region
    $region54: #{tpu_custom_call.1} parent=1 // pred_check
      _
    $region55: #{tpu_custom_call.1} parent=1 // pred_check_branch
      %86 = sbr.rel (0) target = $region57
    $region56: #{tpu_custom_call.1} parent=1 // pred_region
      _
    $region57: #{tpu_custom_call.1} parent=1 // pred_fallthru
      _
    // Predicated region
    $region58: #{tpu_custom_call.1} parent=1 // pred_check
      _
    $region59: #{tpu_custom_call.1} parent=1 // pred_check_branch
      %88 = sbr.rel (0) target = $region61
    $region60: #{tpu_custom_call.1} parent=1 // pred_region
      %89 = dma.done [#allocation3], 256
    $region61: #{tpu_custom_call.1} parent=1 // pred_fallthru
      _
    // Predicated region
    $region62: #{tpu_custom_call.1} parent=1 // pred_check
      _
    $region63: #{tpu_custom_call.1} parent=1 // pred_check_branch
      %91 = sbr.rel (0) target = $region65
    $region64: #{tpu_custom_call.1} parent=1 // pred_region
      %92 = dma.done [#allocation6], 128
    $region65: #{tpu_custom_call.1} parent=1 // pred_fallthru
      _
    // Predicated region
    $region66: #{tpu_custom_call.1} parent=1 // pred_check
      _
    $region67: #{tpu_custom_call.1} parent=1 // pred_check_branch
      %94 = sbr.rel (0) target = $region69
    $region68: #{tpu_custom_call.1} parent=1 // pred_region
      %95 = dma.done [#allocation6], 128
    $region69: #{tpu_custom_call.1} parent=1 // pred_fallthru
      _
    // Predicated region
    $region70: #{tpu_custom_call.1} parent=1 // pred_check
      _
    $region71: #{tpu_custom_call.1} parent=1 // pred_check_branch
      %97 = sbr.rel (0) target = $region73
    $region72: #{tpu_custom_call.1} parent=1 // pred_region
      %98 = dma.done [#allocation9], 256
    $region73: #{tpu_custom_call.1} parent=1 // pred_fallthru
      _
    %v99 = vld [vmem:[%s0] sm:$0xff]
    %v100 = vld [vmem:[%s0 + $0x8] sm:$0xff]
    %v101 = vld [vmem:[%s0 + $0x10] sm:$0xff]
    %v102 = vld [vmem:[%s0 + $0x18] sm:$0xff]
    %v103 = vld [vmem:[%s0 + $0x20] sm:$0xff]
    %v104 = vld [vmem:[%s0 + $0x28] sm:$0xff]
    %v105 = vld [vmem:[%s0 + $0x30] sm:$0xff]
    %v106 = vld [vmem:[%s0 + $0x38] sm:$0xff]
    %v107 = vlaneseq
    %v108 = vand.u32 %v107, 127
    %109 = vset.pattern.permute.xlu0 0
    %110 = vperm.xlu0 %109, %v99
    %v111 = vpop.permute.xlu0 %110
    %112 = vset.pattern.permute.xlu0 0
    %113 = vperm.xlu0 %112, %v100
    %v114 = vpop.permute.xlu0 %113
    %115 = vset.pattern.permute.xlu0 0
    %116 = vperm.xlu0 %115, %v101
    %v117 = vpop.permute.xlu0 %116
    %118 = vset.pattern.permute.xlu0 0
    %119 = vperm.xlu0 %118, %v102
    %v120 = vpop.permute.xlu0 %119
    %121 = vset.pattern.permute.xlu0 0
    %122 = vperm.xlu0 %121, %v103
    %v123 = vpop.permute.xlu0 %122
    %124 = vset.pattern.permute.xlu0 0
    %125 = vperm.xlu0 %124, %v104
    %v126 = vpop.permute.xlu0 %125
    %127 = vset.pattern.permute.xlu0 0
    %128 = vperm.xlu0 %127, %v105
    %v129 = vpop.permute.xlu0 %128
    %130 = vset.pattern.permute.xlu0 0
    %131 = vperm.xlu0 %130, %v106
    %v132 = vpop.permute.xlu0 %131
    %vm133 = vcmp.eq.s32.totalorder %v111, %v108
    %vm134 = vcmp.eq.s32.totalorder %v114, %v108
    %vm135 = vcmp.eq.s32.totalorder %v117, %v108
    %vm136 = vcmp.eq.s32.totalorder %v120, %v108
    %vm137 = vcmp.eq.s32.totalorder %v123, %v108
    %vm138 = vcmp.eq.s32.totalorder %v126, %v108
    %vm139 = vcmp.eq.s32.totalorder %v129, %v108
    %vm140 = vcmp.eq.s32.totalorder %v132, %v108
    %v141 = vsel %vm133, 1, 0
    %v142 = vsel %vm134, 1, 0
    %v143 = vsel %vm135, 1, 0
    %v144 = vsel %vm136, 1, 0
    %v145 = vsel %vm137, 1, 0
    %v146 = vsel %vm138, 1, 0
    %v147 = vsel %vm139, 1, 0
    %v148 = vsel %vm140, 1, 0
    %v149 = vcvt.s32.f32 %v141
    %v150 = vcvt.s32.f32 %v142
    %v151 = vcvt.s32.f32 %v143
    %v152 = vcvt.s32.f32 %v144
    %v153 = vcvt.s32.f32 %v145
    %v154 = vcvt.s32.f32 %v146
    %v155 = vcvt.s32.f32 %v147
    %v156 = vcvt.s32.f32 %v148
    %v157 = vld [vmem:[#allocation2] sm:$0xff]
    %v158 = vld [vmem:[#allocation2 + $0x8] sm:$0xff]
    %vm159 = vcmask 130048
    %v161 = vsel %vm159, %v149, 0
    %v164 = vsel %vm159, %v150, 0
    %v167 = vsel %vm159, %v151, 0
    %v170 = vsel %vm159, %v152, 0
    %v173 = vsel %vm159, %v153, 0
    %v176 = vsel %vm159, %v154, 0
    %v179 = vsel %vm159, %v155, 0
    %v182 = vsel %vm159, %v156, 0
    %184 = vmatprep.subr.mxu0 0.0
    %185 = vmatpush1.msra.mxu0 %v157
    %186 = vmatprep.subr.mxu0 0.0
    %187 = vmatpush1.msra.mxu0 %v158
    %188 = vmatprep.subr.mxu0 0.0
    %189 = vmatpush1.msra.mxu0 0.0
    %190 = vmatprep.subr.mxu0 0.0
    %191 = vmatpush1.msra.mxu0 0.0
    %192 = vmatprep.subr.mxu0 0.0
    %193 = vmatpush1.msra.mxu0 0.0
    %194 = vmatprep.subr.mxu0 0.0
    %195 = vmatpush1.msra.mxu0 0.0
    %196 = vmatprep.subr.mxu0 0.0
    %197 = vmatpush1.msra.mxu0 0.0
    %198 = vmatprep.subr.mxu0 0.0
    %199 = vmatpush1.msra.mxu0 0.0
    %200 = vmatprep.subr.mxu0 0.0
    %201 = vmatpush1.msra.mxu0 0.0
    %202 = vmatprep.subr.mxu0 0.0
    %203 = vmatpush1.msra.mxu0 0.0
    %204 = vmatprep.subr.mxu0 0.0
    %205 = vmatpush1.msra.mxu0 0.0
    %206 = vmatprep.subr.mxu0 0.0
    %207 = vmatpush1.msra.mxu0 0.0
    %208 = vmatprep.subr.mxu0 0.0
    %209 = vmatpush1.msra.mxu0 0.0
    %210 = vmatprep.subr.mxu0 0.0
    %211 = vmatpush1.msra.mxu0 0.0
    %212 = vmatprep.subr.mxu0 0.0
    %213 = vmatpush1.msra.mxu0 0.0
    %214 = vmatprep.subr.mxu0 0.0
    %215 = vmatpush1.msra.mxu0 0.0
    %216 = vmatprep.subr.mxu0 0.0
    %217 = vmatpush1.msra.mxu0 0.0
    %218 = vmatprep.subr.mxu0 0.0
    %219 = vmatpush1.msra.mxu0 0.0
    %220 = vmatprep.subr.mxu0 0.0
    %221 = vmatpush1.msra.mxu0 0.0
    %222 = vmatprep.subr.mxu0 0.0
    %223 = vmatpush1.msra.mxu0 0.0
    %224 = vmatprep.subr.mxu0 0.0
    %225 = vmatpush1.msra.mxu0 0.0
    %226 = vmatprep.subr.mxu0 0.0
    %227 = vmatpush1.msra.mxu0 0.0
    %228 = vmatprep.subr.mxu0 0.0
    %229 = vmatpush1.msra.mxu0 0.0
    %230 = vmatprep.subr.mxu0 0.0
    %231 = vmatpush1.msra.mxu0 0.0
    %232 = vmatprep.subr.mxu0 0.0
    %233 = vmatpush1.msra.mxu0 0.0
    %234 = vmatprep.subr.mxu0 0.0
    %235 = vmatpush1.msra.mxu0 0.0
    %236 = vmatprep.subr.mxu0 0.0
    %237 = vmatpush1.msra.mxu0 0.0
    %238 = vmatprep.subr.mxu0 0.0
    %239 = vmatpush1.msra.mxu0 0.0
    %240 = vmatprep.subr.mxu0 0.0
    %241 = vmatpush1.msra.mxu0 0.0
    %242 = vmatprep.subr.mxu0 0.0
    %243 = vmatpush1.msra.mxu0 0.0
    %244 = vmatprep.subr.mxu0 0.0
    %245 = vmatpush1.msra.mxu0 0.0
    %246 = vmatprep.subr.mxu0 0.0
    %247 = vmatpush1.msra.mxu0 0.0
    %248 = vmatprep.mubr.f32.mxu0 0.0
    %249 = vmatmul.mubr.f32.gmra.mrb[0].mxu0 %v161
    %v250 = vpop.f32.mrb[0].mxu0
    %v251 = vadd.f32 0.0, %v250
    %v252 = vpop.f32.mrb[0].mxu0
    %253 = vmatprep.mubr.f32.mxu0 0.0
    %254 = vmatmul.mubr.f32.gmra.mrb[0].mxu0 %v164
    %v255 = vpop.f32.mrb[0].mxu0
    %v256 = vadd.f32 0.0, %v255
    %v257 = vpop.f32.mrb[0].mxu0
    %258 = vmatprep.mubr.f32.mxu0 0.0
    %259 = vmatmul.mubr.f32.gmra.mrb[0].mxu0 %v167
    %v260 = vpop.f32.mrb[0].mxu0
    %v261 = vadd.f32 0.0, %v260
    %v262 = vpop.f32.mrb[0].mxu0
    %263 = vmatprep.mubr.f32.mxu0 0.0
    %264 = vmatmul.mubr.f32.gmra.mrb[0].mxu0 %v170
    %v265 = vpop.f32.mrb[0].mxu0
    %v266 = vadd.f32 0.0, %v265
    %v267 = vpop.f32.mrb[0].mxu0
    %268 = vmatprep.mubr.f32.mxu0 0.0
    %269 = vmatmul.mubr.f32.gmra.mrb[0].mxu0 %v173
    %v270 = vpop.f32.mrb[0].mxu0
    %v271 = vadd.f32 0.0, %v270
    %v272 = vpop.f32.mrb[0].mxu0
    %273 = vmatprep.mubr.f32.mxu0 0.0
    %274 = vmatmul.mubr.f32.gmra.mrb[0].mxu0 %v176
    %v275 = vpop.f32.mrb[0].mxu0
    %v276 = vadd.f32 0.0, %v275
    %v277 = vpop.f32.mrb[0].mxu0
    %278 = vmatprep.mubr.f32.mxu0 0.0
    %279 = vmatmul.mubr.f32.gmra.mrb[0].mxu0 %v179
    %v280 = vpop.f32.mrb[0].mxu0
    %v281 = vadd.f32 0.0, %v280
    %v282 = vpop.f32.mrb[0].mxu0
    %283 = vmatprep.mubr.f32.mxu0 0.0
    %284 = vmatmul.mubr.f32.gmra.mrb[0].mxu0 %v182
    %v285 = vpop.f32.mrb[0].mxu0
    %v286 = vadd.f32 0.0, %v285
    %v287 = vpop.f32.mrb[0].mxu0
    %288 = vdwg.mxu0
    %v289 = vld [vmem:[%s3] sm:$0xff]
    %v290 = vld [vmem:[%s3 + $0x8] sm:$0xff]
    %v291 = vld [vmem:[%s3 + $0x10] sm:$0xff]
    %v292 = vld [vmem:[%s3 + $0x18] sm:$0xff]
    %v293 = vld [vmem:[%s5] sm:$0xff]
    %v294 = vld [vmem:[%s5 + $0x8] sm:$0xff]
    %v295 = vld [vmem:[%s5 + $0x10] sm:$0xff]
    %v296 = vld [vmem:[%s5 + $0x18] sm:$0xff]
    %v297 = vld [vmem:[%s6] sm:$0xff]
    %v298 = vld [vmem:[%s6 + $0x8] sm:$0xff]
    %v299 = vld [vmem:[%s6 + $0x10] sm:$0xff]
    %v300 = vld [vmem:[%s6 + $0x18] sm:$0xff]
    %v301 = vld [vmem:[%s7] sm:$0x1]
    %v303 = vlaneseq
    %v304 = vshrl.u32 %v303, 7
    %v305 = vsub.s32 0, %v304
    %v306 = vrot.slane %v301, %v305
    %v308 = vld [vmem:[#allocation5] sm:$0xff]
    %v309 = vld [vmem:[#allocation7] sm:$0xff]
    %vm310 = vcmask 261120
    %v312 = vsel %vm310, %v308, 0
    %314 = vmatprep.subr.mxu0 0.0
    %315 = vmatpush1.msra.mxu0 %v289
    %316 = vmatprep.subr.mxu0 0.0
    %317 = vmatpush1.msra.mxu0 %v290
    %318 = vmatprep.subr.mxu0 0.0
    %319 = vmatpush1.msra.mxu0 %v291
    %320 = vmatprep.subr.mxu0 0.0
    %321 = vmatpush1.msra.mxu0 %v292
    %322 = vmatprep.subr.mxu0 0.0
    %323 = vmatpush1.msra.mxu0 0.0
    %324 = vmatprep.subr.mxu0 0.0
    %325 = vmatpush1.msra.mxu0 0.0
    %326 = vmatprep.subr.mxu0 0.0
    %327 = vmatpush1.msra.mxu0 0.0
    %328 = vmatprep.subr.mxu0 0.0
    %329 = vmatpush1.msra.mxu0 0.0
    %330 = vmatprep.subr.mxu0 0.0
    %331 = vmatpush1.msra.mxu0 0.0
    %332 = vmatprep.subr.mxu0 0.0
    %333 = vmatpush1.msra.mxu0 0.0
    %334 = vmatprep.subr.mxu0 0.0
    %335 = vmatpush1.msra.mxu0 0.0
    %336 = vmatprep.subr.mxu0 0.0
    %337 = vmatpush1.msra.mxu0 0.0
    %338 = vmatprep.subr.mxu0 0.0
    %339 = vmatpush1.msra.mxu0 0.0
    %340 = vmatprep.subr.mxu0 0.0
    %341 = vmatpush1.msra.mxu0 0.0
    %342 = vmatprep.subr.mxu0 0.0
    %343 = vmatpush1.msra.mxu0 0.0
    %344 = vmatprep.subr.mxu0 0.0
    %345 = vmatpush1.msra.mxu0 0.0
    %346 = vmatprep.subr.mxu0 0.0
    %347 = vmatpush1.msra.mxu0 0.0
    %348 = vmatprep.subr.mxu0 0.0
    %349 = vmatpush1.msra.mxu0 0.0
    %350 = vmatprep.subr.mxu0 0.0
    %351 = vmatpush1.msra.mxu0 0.0
    %352 = vmatprep.subr.mxu0 0.0
    %353 = vmatpush1.msra.mxu0 0.0
    %354 = vmatprep.subr.mxu0 0.0
    %355 = vmatpush1.msra.mxu0 0.0
    %356 = vmatprep.subr.mxu0 0.0
    %357 = vmatpush1.msra.mxu0 0.0
    %358 = vmatprep.subr.mxu0 0.0
    %359 = vmatpush1.msra.mxu0 0.0
    %360 = vmatprep.subr.mxu0 0.0
    %361 = vmatpush1.msra.mxu0 0.0
    %362 = vmatprep.subr.mxu0 0.0
    %363 = vmatpush1.msra.mxu0 0.0
    %364 = vmatprep.subr.mxu0 0.0
    %365 = vmatpush1.msra.mxu0 0.0
    %366 = vmatprep.subr.mxu0 0.0
    %367 = vmatpush1.msra.mxu0 0.0
    %368 = vmatprep.subr.mxu0 0.0
    %369 = vmatpush1.msra.mxu0 0.0
    %370 = vmatprep.subr.mxu0 0.0
    %371 = vmatpush1.msra.mxu0 0.0
    %372 = vmatprep.subr.mxu0 0.0
    %373 = vmatpush1.msra.mxu0 0.0
    %374 = vmatprep.subr.mxu0 0.0
    %375 = vmatpush1.msra.mxu0 0.0
    %376 = vmatprep.subr.mxu0 0.0
    %377 = vmatpush1.msra.mxu0 0.0
    %378 = vmatprep.mubr.f32.mxu0 0.0
    %379 = vmatmul.mubr.f32.gmra.mrb[0].mxu0 %v312
    %v380 = vpop.f32.mrb[0].mxu0
    %v381 = vadd.f32 %v251, %v380
    %v382 = vpop.f32.mrb[0].mxu0
    %383 = vdwg.mxu0
    %v384 = vtanh.pop %v381
    %v386 = vsel %vm310, %v384, 0
    %388 = vmatprep.subr.mxu0 0.0
    %389 = vmatpush1.msra.mxu0 %v289
    %390 = vmatprep.subr.mxu0 0.0
    %391 = vmatpush1.msra.mxu0 %v290
    %392 = vmatprep.subr.mxu0 0.0
    %393 = vmatpush1.msra.mxu0 %v291
    %394 = vmatprep.subr.mxu0 0.0
    %395 = vmatpush1.msra.mxu0 %v292
    %396 = vmatprep.subr.mxu0 0.0
    %397 = vmatpush1.msra.mxu0 0.0
    %398 = vmatprep.subr.mxu0 0.0
    %399 = vmatpush1.msra.mxu0 0.0
    %400 = vmatprep.subr.mxu0 0.0
    %401 = vmatpush1.msra.mxu0 0.0
    %402 = vmatprep.subr.mxu0 0.0
    %403 = vmatpush1.msra.mxu0 0.0
    %404 = vmatprep.subr.mxu0 0.0
    %405 = vmatpush1.msra.mxu0 0.0
    %406 = vmatprep.subr.mxu0 0.0
    %407 = vmatpush1.msra.mxu0 0.0
    %408 = vmatprep.subr.mxu0 0.0
    %409 = vmatpush1.msra.mxu0 0.0
    %410 = vmatprep.subr.mxu0 0.0
    %411 = vmatpush1.msra.mxu0 0.0
    %412 = vmatprep.subr.mxu0 0.0
    %413 = vmatpush1.msra.mxu0 0.0
    %414 = vmatprep.subr.mxu0 0.0
    %415 = vmatpush1.msra.mxu0 0.0
    %416 = vmatprep.subr.mxu0 0.0
    %417 = vmatpush1.msra.mxu0 0.0
    %418 = vmatprep.subr.mxu0 0.0
    %419 = vmatpush1.msra.mxu0 0.0
    %420 = vmatprep.subr.mxu0 0.0
    %421 = vmatpush1.msra.mxu0 0.0
    %422 = vmatprep.subr.mxu0 0.0
    %423 = vmatpush1.msra.mxu0 0.0
    %424 = vmatprep.subr.mxu0 0.0
    %425 = vmatpush1.msra.mxu0 0.0
    %426 = vmatprep.subr.mxu0 0.0
    %427 = vmatpush1.msra.mxu0 0.0
    %428 = vmatprep.subr.mxu0 0.0
    %429 = vmatpush1.msra.mxu0 0.0
    %430 = vmatprep.subr.mxu0 0.0
    %431 = vmatpush1.msra.mxu0 0.0
    %432 = vmatprep.subr.mxu0 0.0
    %433 = vmatpush1.msra.mxu0 0.0
    %434 = vmatprep.subr.mxu0 0.0
    %435 = vmatpush1.msra.mxu0 0.0
    %436 = vmatprep.subr.mxu0 0.0
    %437 = vmatpush1.msra.mxu0 0.0
    %438 = vmatprep.subr.mxu0 0.0
    %439 = vmatpush1.msra.mxu0 0.0
    %440 = vmatprep.subr.mxu0 0.0
    %441 = vmatpush1.msra.mxu0 0.0
    %442 = vmatprep.subr.mxu0 0.0
    %443 = vmatpush1.msra.mxu0 0.0
    %444 = vmatprep.subr.mxu0 0.0
    %445 = vmatpush1.msra.mxu0 0.0
    %446 = vmatprep.subr.mxu0 0.0
    %447 = vmatpush1.msra.mxu0 0.0
    %448 = vmatprep.subr.mxu0 0.0
    %449 = vmatpush1.msra.mxu0 0.0
    %450 = vmatprep.subr.mxu0 0.0
    %451 = vmatpush1.msra.mxu0 0.0
    %452 = vmatprep.mubr.f32.mxu0 0.0
    %453 = vmatmul.mubr.f32.gmra.mrb[0].mxu0 %v386
    %v454 = vpop.f32.mrb[0].mxu0
    %v455 = vadd.f32 %v256, %v454
    %v456 = vpop.f32.mrb[0].mxu0
    %457 = vdwg.mxu0
    %v458 = vtanh.pop %v455
    %459 = vmatprep.subr.mxu0 0.0
    %460 = vmatpush1.msra.mxu0 %v297
    %461 = vmatprep.subr.mxu0 0.0
    %462 = vmatpush1.msra.mxu0 %v298
    %463 = vmatprep.subr.mxu0 0.0
    %464 = vmatpush1.msra.mxu0 %v299
    %465 = vmatprep.subr.mxu0 0.0
    %466 = vmatpush1.msra.mxu0 %v300
    %467 = vmatprep.subr.mxu0 0.0
    %468 = vmatpush1.msra.mxu0 0.0
    %469 = vmatprep.subr.mxu0 0.0
    %470 = vmatpush1.msra.mxu0 0.0
    %471 = vmatprep.subr.mxu0 0.0
    %472 = vmatpush1.msra.mxu0 0.0
    %473 = vmatprep.subr.mxu0 0.0
    %474 = vmatpush1.msra.mxu0 0.0
    %475 = vmatprep.subr.mxu0 0.0
    %476 = vmatpush1.msra.mxu0 0.0
    %477 = vmatprep.subr.mxu0 0.0
    %478 = vmatpush1.msra.mxu0 0.0
    %479 = vmatprep.subr.mxu0 0.0
    %480 = vmatpush1.msra.mxu0 0.0
    %481 = vmatprep.subr.mxu0 0.0
    %482 = vmatpush1.msra.mxu0 0.0
    %483 = vmatprep.subr.mxu0 0.0
    %484 = vmatpush1.msra.mxu0 0.0
    %485 = vmatprep.subr.mxu0 0.0
    %486 = vmatpush1.msra.mxu0 0.0
    %487 = vmatprep.subr.mxu0 0.0
    %488 = vmatpush1.msra.mxu0 0.0
    %489 = vmatprep.subr.mxu0 0.0
    %490 = vmatpush1.msra.mxu0 0.0
    %491 = vmatprep.subr.mxu0 0.0
    %492 = vmatpush1.msra.mxu0 0.0
    %493 = vmatprep.subr.mxu0 0.0
    %494 = vmatpush1.msra.mxu0 0.0
    %495 = vmatprep.subr.mxu0 0.0
    %496 = vmatpush1.msra.mxu0 0.0
    %497 = vmatprep.subr.mxu0 0.0
    %498 = vmatpush1.msra.mxu0 0.0
    %499 = vmatprep.subr.mxu0 0.0
    %500 = vmatpush1.msra.mxu0 0.0
    %501 = vmatprep.subr.mxu0 0.0
    %502 = vmatpush1.msra.mxu0 0.0
    %503 = vmatprep.subr.mxu0 0.0
    %504 = vmatpush1.msra.mxu0 0.0
    %505 = vmatprep.subr.mxu0 0.0
    %506 = vmatpush1.msra.mxu0 0.0
    %507 = vmatprep.subr.mxu0 0.0
    %508 = vmatpush1.msra.mxu0 0.0
    %509 = vmatprep.subr.mxu0 0.0
    %510 = vmatpush1.msra.mxu0 0.0
    %511 = vmatprep.subr.mxu0 0.0
    %512 = vmatpush1.msra.mxu0 0.0
    %513 = vmatprep.subr.mxu0 0.0
    %514 = vmatpush1.msra.mxu0 0.0
    %515 = vmatprep.subr.mxu0 0.0
    %516 = vmatpush1.msra.mxu0 0.0
    %517 = vmatprep.subr.mxu0 0.0
    %518 = vmatpush1.msra.mxu0 0.0
    %519 = vmatprep.subr.mxu0 0.0
    %520 = vmatpush1.msra.mxu0 0.0
    %521 = vmatprep.subr.mxu0 0.0
    %522 = vmatpush1.msra.mxu0 0.0
    %523 = vmatprep.mubr.f32.mxu0 0.0
    %524 = vmatmul.mubr.f32.gmra.mrb[0].mxu0 %v386
    %v525 = vpop.f32.mrb[0].mxu0
    %v526 = vadd.f32 %v306, %v525
    %v527 = vpop.f32.mrb[0].mxu0
    %528 = vdwg.mxu0
    %v530 = vsel %vm310, %v309, 0
    %532 = vmatprep.subr.mxu0 0.0
    %533 = vmatpush1.msra.mxu0 %v293
    %534 = vmatprep.subr.mxu0 0.0
    %535 = vmatpush1.msra.mxu0 %v294
    %536 = vmatprep.subr.mxu0 0.0
    %537 = vmatpush1.msra.mxu0 %v295
    %538 = vmatprep.subr.mxu0 0.0
    %539 = vmatpush1.msra.mxu0 %v296
    %540 = vmatprep.subr.mxu0 0.0
    %541 = vmatpush1.msra.mxu0 0.0
    %542 = vmatprep.subr.mxu0 0.0
    %543 = vmatpush1.msra.mxu0 0.0
    %544 = vmatprep.subr.mxu0 0.0
    %545 = vmatpush1.msra.mxu0 0.0
    %546 = vmatprep.subr.mxu0 0.0
    %547 = vmatpush1.msra.mxu0 0.0
    %548 = vmatprep.subr.mxu0 0.0
    %549 = vmatpush1.msra.mxu0 0.0
    %550 = vmatprep.subr.mxu0 0.0
    %551 = vmatpush1.msra.mxu0 0.0
    %552 = vmatprep.subr.mxu0 0.0
    %553 = vmatpush1.msra.mxu0 0.0
    %554 = vmatprep.subr.mxu0 0.0
    %555 = vmatpush1.msra.mxu0 0.0
    %556 = vmatprep.subr.mxu0 0.0
    %557 = vmatpush1.msra.mxu0 0.0
    %558 = vmatprep.subr.mxu0 0.0
    %559 = vmatpush1.msra.mxu0 0.0
    %560 = vmatprep.subr.mxu0 0.0
    %561 = vmatpush1.msra.mxu0 0.0
    %562 = vmatprep.subr.mxu0 0.0
    %563 = vmatpush1.msra.mxu0 0.0
    %564 = vmatprep.subr.mxu0 0.0
    %565 = vmatpush1.msra.mxu0 0.0
    %566 = vmatprep.subr.mxu0 0.0
    %567 = vmatpush1.msra.mxu0 0.0
    %568 = vmatprep.subr.mxu0 0.0
    %569 = vmatpush1.msra.mxu0 0.0
    %570 = vmatprep.subr.mxu0 0.0
    %571 = vmatpush1.msra.mxu0 0.0
    %572 = vmatprep.subr.mxu0 0.0
    %573 = vmatpush1.msra.mxu0 0.0
    %574 = vmatprep.subr.mxu0 0.0
    %575 = vmatpush1.msra.mxu0 0.0
    %576 = vmatprep.subr.mxu0 0.0
    %577 = vmatpush1.msra.mxu0 0.0
    %578 = vmatprep.subr.mxu0 0.0
    %579 = vmatpush1.msra.mxu0 0.0
    %580 = vmatprep.subr.mxu0 0.0
    %581 = vmatpush1.msra.mxu0 0.0
    %582 = vmatprep.subr.mxu0 0.0
    %583 = vmatpush1.msra.mxu0 0.0
    %584 = vmatprep.subr.mxu0 0.0
    %585 = vmatpush1.msra.mxu0 0.0
    %586 = vmatprep.subr.mxu0 0.0
    %587 = vmatpush1.msra.mxu0 0.0
    %588 = vmatprep.subr.mxu0 0.0
    %589 = vmatpush1.msra.mxu0 0.0
    %590 = vmatprep.subr.mxu0 0.0
    %591 = vmatpush1.msra.mxu0 0.0
    %592 = vmatprep.subr.mxu0 0.0
    %593 = vmatpush1.msra.mxu0 0.0
    %594 = vmatprep.subr.mxu0 0.0
    %595 = vmatpush1.msra.mxu0 0.0
    %596 = vmatprep.mubr.f32.mxu0 0.0
    %597 = vmatmul.mubr.f32.gmra.mrb[0].mxu0 %v530
    %v598 = vpop.f32.mrb[0].mxu0
    %v599 = vadd.f32 %v526, %v598
    %v600 = vpop.f32.mrb[0].mxu0
    %601 = vdwg.mxu0
    %v602 = vtanh.pop %v599
    %v604 = vsel %vm310, %v458, 0
    %606 = vmatprep.subr.mxu0 0.0
    %607 = vmatpush1.msra.mxu0 %v289
    %608 = vmatprep.subr.mxu0 0.0
    %609 = vmatpush1.msra.mxu0 %v290
    %610 = vmatprep.subr.mxu0 0.0
    %611 = vmatpush1.msra.mxu0 %v291
    %612 = vmatprep.subr.mxu0 0.0
    %613 = vmatpush1.msra.mxu0 %v292
    %614 = vmatprep.subr.mxu0 0.0
    %615 = vmatpush1.msra.mxu0 0.0
    %616 = vmatprep.subr.mxu0 0.0
    %617 = vmatpush1.msra.mxu0 0.0
    %618 = vmatprep.subr.mxu0 0.0
    %619 = vmatpush1.msra.mxu0 0.0
    %620 = vmatprep.subr.mxu0 0.0
    %621 = vmatpush1.msra.mxu0 0.0
    %622 = vmatprep.subr.mxu0 0.0
    %623 = vmatpush1.msra.mxu0 0.0
    %624 = vmatprep.subr.mxu0 0.0
    %625 = vmatpush1.msra.mxu0 0.0
    %626 = vmatprep.subr.mxu0 0.0
    %627 = vmatpush1.msra.mxu0 0.0
    %628 = vmatprep.subr.mxu0 0.0
    %629 = vmatpush1.msra.mxu0 0.0
    %630 = vmatprep.subr.mxu0 0.0
    %631 = vmatpush1.msra.mxu0 0.0
    %632 = vmatprep.subr.mxu0 0.0
    %633 = vmatpush1.msra.mxu0 0.0
    %634 = vmatprep.subr.mxu0 0.0
    %635 = vmatpush1.msra.mxu0 0.0
    %636 = vmatprep.subr.mxu0 0.0
    %637 = vmatpush1.msra.mxu0 0.0
    %638 = vmatprep.subr.mxu0 0.0
    %639 = vmatpush1.msra.mxu0 0.0
    %640 = vmatprep.subr.mxu0 0.0
    %641 = vmatpush1.msra.mxu0 0.0
    %642 = vmatprep.subr.mxu0 0.0
    %643 = vmatpush1.msra.mxu0 0.0
    %644 = vmatprep.subr.mxu0 0.0
    %645 = vmatpush1.msra.mxu0 0.0
    %646 = vmatprep.subr.mxu0 0.0
    %647 = vmatpush1.msra.mxu0 0.0
    %648 = vmatprep.subr.mxu0 0.0
    %649 = vmatpush1.msra.mxu0 0.0
    %650 = vmatprep.subr.mxu0 0.0
    %651 = vmatpush1.msra.mxu0 0.0
    %652 = vmatprep.subr.mxu0 0.0
    %653 = vmatpush1.msra.mxu0 0.0
    %654 = vmatprep.subr.mxu0 0.0
    %655 = vmatpush1.msra.mxu0 0.0
    %656 = vmatprep.subr.mxu0 0.0
    %657 = vmatpush1.msra.mxu0 0.0
    %658 = vmatprep.subr.mxu0 0.0
    %659 = vmatpush1.msra.mxu0 0.0
    %660 = vmatprep.subr.mxu0 0.0
    %661 = vmatpush1.msra.mxu0 0.0
    %662 = vmatprep.subr.mxu0 0.0
    %663 = vmatpush1.msra.mxu0 0.0
    %664 = vmatprep.subr.mxu0 0.0
    %665 = vmatpush1.msra.mxu0 0.0
    %666 = vmatprep.subr.mxu0 0.0
    %667 = vmatpush1.msra.mxu0 0.0
    %668 = vmatprep.subr.mxu0 0.0
    %669 = vmatpush1.msra.mxu0 0.0
    %670 = vmatprep.mubr.f32.mxu0 0.0
    %671 = vmatmul.mubr.f32.gmra.mrb[0].mxu0 %v604
    %v672 = vpop.f32.mrb[0].mxu0
    %v673 = vadd.f32 %v261, %v672
    %v674 = vpop.f32.mrb[0].mxu0
    %675 = vdwg.mxu0
    %v676 = vtanh.pop %v673
    %677 = vmatprep.subr.mxu0 0.0
    %678 = vmatpush1.msra.mxu0 %v297
    %679 = vmatprep.subr.mxu0 0.0
    %680 = vmatpush1.msra.mxu0 %v298
    %681 = vmatprep.subr.mxu0 0.0
    %682 = vmatpush1.msra.mxu0 %v299
    %683 = vmatprep.subr.mxu0 0.0
    %684 = vmatpush1.msra.mxu0 %v300
    %685 = vmatprep.subr.mxu0 0.0
    %686 = vmatpush1.msra.mxu0 0.0
    %687 = vmatprep.subr.mxu0 0.0
    %688 = vmatpush1.msra.mxu0 0.0
    %689 = vmatprep.subr.mxu0 0.0
    %690 = vmatpush1.msra.mxu0 0.0
    %691 = vmatprep.subr.mxu0 0.0
    %692 = vmatpush1.msra.mxu0 0.0
    %693 = vmatprep.subr.mxu0 0.0
    %694 = vmatpush1.msra.mxu0 0.0
    %695 = vmatprep.subr.mxu0 0.0
    %696 = vmatpush1.msra.mxu0 0.0
    %697 = vmatprep.subr.mxu0 0.0
    %698 = vmatpush1.msra.mxu0 0.0
    %699 = vmatprep.subr.mxu0 0.0
    %700 = vmatpush1.msra.mxu0 0.0
    %701 = vmatprep.subr.mxu0 0.0
    %702 = vmatpush1.msra.mxu0 0.0
    %703 = vmatprep.subr.mxu0 0.0
    %704 = vmatpush1.msra.mxu0 0.0
    %705 = vmatprep.subr.mxu0 0.0
    %706 = vmatpush1.msra.mxu0 0.0
    %707 = vmatprep.subr.mxu0 0.0
    %708 = vmatpush1.msra.mxu0 0.0
    %709 = vmatprep.subr.mxu0 0.0
    %710 = vmatpush1.msra.mxu0 0.0
    %711 = vmatprep.subr.mxu0 0.0
    %712 = vmatpush1.msra.mxu0 0.0
    %713 = vmatprep.subr.mxu0 0.0
    %714 = vmatpush1.msra.mxu0 0.0
    %715 = vmatprep.subr.mxu0 0.0
    %716 = vmatpush1.msra.mxu0 0.0
    %717 = vmatprep.subr.mxu0 0.0
    %718 = vmatpush1.msra.mxu0 0.0
    %719 = vmatprep.subr.mxu0 0.0
    %720 = vmatpush1.msra.mxu0 0.0
    %721 = vmatprep.subr.mxu0 0.0
    %722 = vmatpush1.msra.mxu0 0.0
    %723 = vmatprep.subr.mxu0 0.0
    %724 = vmatpush1.msra.mxu0 0.0
    %725 = vmatprep.subr.mxu0 0.0
    %726 = vmatpush1.msra.mxu0 0.0
    %727 = vmatprep.subr.mxu0 0.0
    %728 = vmatpush1.msra.mxu0 0.0
    %729 = vmatprep.subr.mxu0 0.0
    %730 = vmatpush1.msra.mxu0 0.0
    %731 = vmatprep.subr.mxu0 0.0
    %732 = vmatpush1.msra.mxu0 0.0
    %733 = vmatprep.subr.mxu0 0.0
    %734 = vmatpush1.msra.mxu0 0.0
    %735 = vmatprep.subr.mxu0 0.0
    %736 = vmatpush1.msra.mxu0 0.0
    %737 = vmatprep.subr.mxu0 0.0
    %738 = vmatpush1.msra.mxu0 0.0
    %739 = vmatprep.subr.mxu0 0.0
    %740 = vmatpush1.msra.mxu0 0.0
    %741 = vmatprep.mubr.f32.mxu0 0.0
    %742 = vmatmul.mubr.f32.gmra.mrb[0].mxu0 %v604
    %v743 = vpop.f32.mrb[0].mxu0
    %v744 = vadd.f32 %v306, %v743
    %v745 = vpop.f32.mrb[0].mxu0
    %746 = vdwg.mxu0
    %v748 = vsel %vm310, %v602, 0
    %750 = vmatprep.subr.mxu0 0.0
    %751 = vmatpush1.msra.mxu0 %v293
    %752 = vmatprep.subr.mxu0 0.0
    %753 = vmatpush1.msra.mxu0 %v294
    %754 = vmatprep.subr.mxu0 0.0
    %755 = vmatpush1.msra.mxu0 %v295
    %756 = vmatprep.subr.mxu0 0.0
    %757 = vmatpush1.msra.mxu0 %v296
    %758 = vmatprep.subr.mxu0 0.0
    %759 = vmatpush1.msra.mxu0 0.0
    %760 = vmatprep.subr.mxu0 0.0
    %761 = vmatpush1.msra.mxu0 0.0
    %762 = vmatprep.subr.mxu0 0.0
    %763 = vmatpush1.msra.mxu0 0.0
    %764 = vmatprep.subr.mxu0 0.0
    %765 = vmatpush1.msra.mxu0 0.0
    %766 = vmatprep.subr.mxu0 0.0
    %767 = vmatpush1.msra.mxu0 0.0
    %768 = vmatprep.subr.mxu0 0.0
    %769 = vmatpush1.msra.mxu0 0.0
    %770 = vmatprep.subr.mxu0 0.0
    %771 = vmatpush1.msra.mxu0 0.0
    %772 = vmatprep.subr.mxu0 0.0
    %773 = vmatpush1.msra.mxu0 0.0
    %774 = vmatprep.subr.mxu0 0.0
    %775 = vmatpush1.msra.mxu0 0.0
    %776 = vmatprep.subr.mxu0 0.0
    %777 = vmatpush1.msra.mxu0 0.0
    %778 = vmatprep.subr.mxu0 0.0
    %779 = vmatpush1.msra.mxu0 0.0
    %780 = vmatprep.subr.mxu0 0.0
    %781 = vmatpush1.msra.mxu0 0.0
    %782 = vmatprep.subr.mxu0 0.0
    %783 = vmatpush1.msra.mxu0 0.0
    %784 = vmatprep.subr.mxu0 0.0
    %785 = vmatpush1.msra.mxu0 0.0
    %786 = vmatprep.subr.mxu0 0.0
    %787 = vmatpush1.msra.mxu0 0.0
    %788 = vmatprep.subr.mxu0 0.0
    %789 = vmatpush1.msra.mxu0 0.0
    %790 = vmatprep.subr.mxu0 0.0
    %791 = vmatpush1.msra.mxu0 0.0
    %792 = vmatprep.subr.mxu0 0.0
    %793 = vmatpush1.msra.mxu0 0.0
    %794 = vmatprep.subr.mxu0 0.0
    %795 = vmatpush1.msra.mxu0 0.0
    %796 = vmatprep.subr.mxu0 0.0
    %797 = vmatpush1.msra.mxu0 0.0
    %798 = vmatprep.subr.mxu0 0.0
    %799 = vmatpush1.msra.mxu0 0.0
    %800 = vmatprep.subr.mxu0 0.0
    %801 = vmatpush1.msra.mxu0 0.0
    %802 = vmatprep.subr.mxu0 0.0
    %803 = vmatpush1.msra.mxu0 0.0
    %804 = vmatprep.subr.mxu0 0.0
    %805 = vmatpush1.msra.mxu0 0.0
    %806 = vmatprep.subr.mxu0 0.0
    %807 = vmatpush1.msra.mxu0 0.0
    %808 = vmatprep.subr.mxu0 0.0
    %809 = vmatpush1.msra.mxu0 0.0
    %810 = vmatprep.subr.mxu0 0.0
    %811 = vmatpush1.msra.mxu0 0.0
    %812 = vmatprep.subr.mxu0 0.0
    %813 = vmatpush1.msra.mxu0 0.0
    %814 = vmatprep.mubr.f32.mxu0 0.0
    %815 = vmatmul.mubr.f32.gmra.mrb[0].mxu0 %v748
    %v816 = vpop.f32.mrb[0].mxu0
    %v817 = vadd.f32 %v744, %v816
    %v818 = vpop.f32.mrb[0].mxu0
    %819 = vdwg.mxu0
    %v820 = vtanh.pop %v817
    %v822 = vsel %vm310, %v676, 0
    %824 = vmatprep.subr.mxu0 0.0
    %825 = vmatpush1.msra.mxu0 %v289
    %826 = vmatprep.subr.mxu0 0.0
    %827 = vmatpush1.msra.mxu0 %v290
    %828 = vmatprep.subr.mxu0 0.0
    %829 = vmatpush1.msra.mxu0 %v291
    %830 = vmatprep.subr.mxu0 0.0
    %831 = vmatpush1.msra.mxu0 %v292
    %832 = vmatprep.subr.mxu0 0.0
    %833 = vmatpush1.msra.mxu0 0.0
    %834 = vmatprep.subr.mxu0 0.0
    %835 = vmatpush1.msra.mxu0 0.0
    %836 = vmatprep.subr.mxu0 0.0
    %837 = vmatpush1.msra.mxu0 0.0
    %838 = vmatprep.subr.mxu0 0.0
    %839 = vmatpush1.msra.mxu0 0.0
    %840 = vmatprep.subr.mxu0 0.0
    %841 = vmatpush1.msra.mxu0 0.0
    %842 = vmatprep.subr.mxu0 0.0
    %843 = vmatpush1.msra.mxu0 0.0
    %844 = vmatprep.subr.mxu0 0.0
    %845 = vmatpush1.msra.mxu0 0.0
    %846 = vmatprep.subr.mxu0 0.0
    %847 = vmatpush1.msra.mxu0 0.0
    %848 = vmatprep.subr.mxu0 0.0
    %849 = vmatpush1.msra.mxu0 0.0
    %850 = vmatprep.subr.mxu0 0.0
    %851 = vmatpush1.msra.mxu0 0.0
    %852 = vmatprep.subr.mxu0 0.0
    %853 = vmatpush1.msra.mxu0 0.0
    %854 = vmatprep.subr.mxu0 0.0
    %855 = vmatpush1.msra.mxu0 0.0
    %856 = vmatprep.subr.mxu0 0.0
    %857 = vmatpush1.msra.mxu0 0.0
    %858 = vmatprep.subr.mxu0 0.0
    %859 = vmatpush1.msra.mxu0 0.0
    %860 = vmatprep.subr.mxu0 0.0
    %861 = vmatpush1.msra.mxu0 0.0
    %862 = vmatprep.subr.mxu0 0.0
    %863 = vmatpush1.msra.mxu0 0.0
    %864 = vmatprep.subr.mxu0 0.0
    %865 = vmatpush1.msra.mxu0 0.0
    %866 = vmatprep.subr.mxu0 0.0
    %867 = vmatpush1.msra.mxu0 0.0
    %868 = vmatprep.subr.mxu0 0.0
    %869 = vmatpush1.msra.mxu0 0.0
    %870 = vmatprep.subr.mxu0 0.0
    %871 = vmatpush1.msra.mxu0 0.0
    %872 = vmatprep.subr.mxu0 0.0
    %873 = vmatpush1.msra.mxu0 0.0
    %874 = vmatprep.subr.mxu0 0.0
    %875 = vmatpush1.msra.mxu0 0.0
    %876 = vmatprep.subr.mxu0 0.0
    %877 = vmatpush1.msra.mxu0 0.0
    %878 = vmatprep.subr.mxu0 0.0
    %879 = vmatpush1.msra.mxu0 0.0
    %880 = vmatprep.subr.mxu0 0.0
    %881 = vmatpush1.msra.mxu0 0.0
    %882 = vmatprep.subr.mxu0 0.0
    %883 = vmatpush1.msra.mxu0 0.0
    %884 = vmatprep.subr.mxu0 0.0
    %885 = vmatpush1.msra.mxu0 0.0
    %886 = vmatprep.subr.mxu0 0.0
    %887 = vmatpush1.msra.mxu0 0.0
    %888 = vmatprep.mubr.f32.mxu0 0.0
    %889 = vmatmul.mubr.f32.gmra.mrb[0].mxu0 %v822
    %v890 = vpop.f32.mrb[0].mxu0
    %v891 = vadd.f32 %v266, %v890
    %v892 = vpop.f32.mrb[0].mxu0
    %893 = vdwg.mxu0
    %v894 = vtanh.pop %v891
    %895 = vmatprep.subr.mxu0 0.0
    %896 = vmatpush1.msra.mxu0 %v297
    %897 = vmatprep.subr.mxu0 0.0
    %898 = vmatpush1.msra.mxu0 %v298
    %899 = vmatprep.subr.mxu0 0.0
    %900 = vmatpush1.msra.mxu0 %v299
    %901 = vmatprep.subr.mxu0 0.0
    %902 = vmatpush1.msra.mxu0 %v300
    %903 = vmatprep.subr.mxu0 0.0
    %904 = vmatpush1.msra.mxu0 0.0
    %905 = vmatprep.subr.mxu0 0.0
    %906 = vmatpush1.msra.mxu0 0.0
    %907 = vmatprep.subr.mxu0 0.0
    %908 = vmatpush1.msra.mxu0 0.0
    %909 = vmatprep.subr.mxu0 0.0
    %910 = vmatpush1.msra.mxu0 0.0
    %911 = vmatprep.subr.mxu0 0.0
    %912 = vmatpush1.msra.mxu0 0.0
    %913 = vmatprep.subr.mxu0 0.0
    %914 = vmatpush1.msra.mxu0 0.0
    %915 = vmatprep.subr.mxu0 0.0
    %916 = vmatpush1.msra.mxu0 0.0
    %917 = vmatprep.subr.mxu0 0.0
    %918 = vmatpush1.msra.mxu0 0.0
    %919 = vmatprep.subr.mxu0 0.0
    %920 = vmatpush1.msra.mxu0 0.0
    %921 = vmatprep.subr.mxu0 0.0
    %922 = vmatpush1.msra.mxu0 0.0
    %923 = vmatprep.subr.mxu0 0.0
    %924 = vmatpush1.msra.mxu0 0.0
    %925 = vmatprep.subr.mxu0 0.0
    %926 = vmatpush1.msra.mxu0 0.0
    %927 = vmatprep.subr.mxu0 0.0
    %928 = vmatpush1.msra.mxu0 0.0
    %929 = vmatprep.subr.mxu0 0.0
    %930 = vmatpush1.msra.mxu0 0.0
    %931 = vmatprep.subr.mxu0 0.0
    %932 = vmatpush1.msra.mxu0 0.0
    %933 = vmatprep.subr.mxu0 0.0
    %934 = vmatpush1.msra.mxu0 0.0
    %935 = vmatprep.subr.mxu0 0.0
    %936 = vmatpush1.msra.mxu0 0.0
    %937 = vmatprep.subr.mxu0 0.0
    %938 = vmatpush1.msra.mxu0 0.0
    %939 = vmatprep.subr.mxu0 0.0
    %940 = vmatpush1.msra.mxu0 0.0
    %941 = vmatprep.subr.mxu0 0.0
    %942 = vmatpush1.msra.mxu0 0.0
    %943 = vmatprep.subr.mxu0 0.0
    %944 = vmatpush1.msra.mxu0 0.0
    %945 = vmatprep.subr.mxu0 0.0
    %946 = vmatpush1.msra.mxu0 0.0
    %947 = vmatprep.subr.mxu0 0.0
    %948 = vmatpush1.msra.mxu0 0.0
    %949 = vmatprep.subr.mxu0 0.0
    %950 = vmatpush1.msra.mxu0 0.0
    %951 = vmatprep.subr.mxu0 0.0
    %952 = vmatpush1.msra.mxu0 0.0
    %953 = vmatprep.subr.mxu0 0.0
    %954 = vmatpush1.msra.mxu0 0.0
    %955 = vmatprep.subr.mxu0 0.0
    %956 = vmatpush1.msra.mxu0 0.0
    %957 = vmatprep.subr.mxu0 0.0
    %958 = vmatpush1.msra.mxu0 0.0
    %959 = vmatprep.mubr.f32.mxu0 0.0
    %960 = vmatmul.mubr.f32.gmra.mrb[0].mxu0 %v822
    %v961 = vpop.f32.mrb[0].mxu0
    %v962 = vadd.f32 %v306, %v961
    %v963 = vpop.f32.mrb[0].mxu0
    %964 = vdwg.mxu0
    %v966 = vsel %vm310, %v820, 0
    %968 = vmatprep.subr.mxu0 0.0
    %969 = vmatpush1.msra.mxu0 %v293
    %970 = vmatprep.subr.mxu0 0.0
    %971 = vmatpush1.msra.mxu0 %v294
    %972 = vmatprep.subr.mxu0 0.0
    %973 = vmatpush1.msra.mxu0 %v295
    %974 = vmatprep.subr.mxu0 0.0
    %975 = vmatpush1.msra.mxu0 %v296
    %976 = vmatprep.subr.mxu0 0.0
    %977 = vmatpush1.msra.mxu0 0.0
    %978 = vmatprep.subr.mxu0 0.0
    %979 = vmatpush1.msra.mxu0 0.0
    %980 = vmatprep.subr.mxu0 0.0
    %981 = vmatpush1.msra.mxu0 0.0
    %982 = vmatprep.subr.mxu0 0.0
    %983 = vmatpush1.msra.mxu0 0.0
    %984 = vmatprep.subr.mxu0 0.0
    %985 = vmatpush1.msra.mxu0 0.0
    %986 = vmatprep.subr.mxu0 0.0
    %987 = vmatpush1.msra.mxu0 0.0
    %988 = vmatprep.subr.mxu0 0.0
    %989 = vmatpush1.msra.mxu0 0.0
    %990 = vmatprep.subr.mxu0 0.0
    %991 = vmatpush1.msra.mxu0 0.0
    %992 = vmatprep.subr.mxu0 0.0
    %993 = vmatpush1.msra.mxu0 0.0
    %994 = vmatprep.subr.mxu0 0.0
    %995 = vmatpush1.msra.mxu0 0.0
    %996 = vmatprep.subr.mxu0 0.0
    %997 = vmatpush1.msra.mxu0 0.0
    %998 = vmatprep.subr.mxu0 0.0
    %999 = vmatpush1.msra.mxu0 0.0
    %1000 = vmatprep.subr.mxu0 0.0
    %1001 = vmatpush1.msra.mxu0 0.0
    %1002 = vmatprep.subr.mxu0 0.0
    %1003 = vmatpush1.msra.mxu0 0.0
    %1004 = vmatprep.subr.mxu0 0.0
    %1005 = vmatpush1.msra.mxu0 0.0
    %1006 = vmatprep.subr.mxu0 0.0
    %1007 = vmatpush1.msra.mxu0 0.0
    %1008 = vmatprep.subr.mxu0 0.0
    %1009 = vmatpush1.msra.mxu0 0.0
    %1010 = vmatprep.subr.mxu0 0.0
    %1011 = vmatpush1.msra.mxu0 0.0
    %1012 = vmatprep.subr.mxu0 0.0
    %1013 = vmatpush1.msra.mxu0 0.0
    %1014 = vmatprep.subr.mxu0 0.0
    %1015 = vmatpush1.msra.mxu0 0.0
    %1016 = vmatprep.subr.mxu0 0.0
    %1017 = vmatpush1.msra.mxu0 0.0
    %1018 = vmatprep.subr.mxu0 0.0
    %1019 = vmatpush1.msra.mxu0 0.0
    %1020 = vmatprep.subr.mxu0 0.0
    %1021 = vmatpush1.msra.mxu0 0.0
    %1022 = vmatprep.subr.mxu0 0.0
    %1023 = vmatpush1.msra.mxu0 0.0
    %1024 = vmatprep.subr.mxu0 0.0
    %1025 = vmatpush1.msra.mxu0 0.0
    %1026 = vmatprep.subr.mxu0 0.0
    %1027 = vmatpush1.msra.mxu0 0.0
    %1028 = vmatprep.subr.mxu0 0.0
    %1029 = vmatpush1.msra.mxu0 0.0
    %1030 = vmatprep.subr.mxu0 0.0
    %1031 = vmatpush1.msra.mxu0 0.0
    %1032 = vmatprep.mubr.f32.mxu0 0.0
    %1033 = vmatmul.mubr.f32.gmra.mrb[0].mxu0 %v966
    %v1034 = vpop.f32.mrb[0].mxu0
    %v1035 = vadd.f32 %v962, %v1034
    %v1036 = vpop.f32.mrb[0].mxu0
    %1037 = vdwg.mxu0
    %v1038 = vtanh.pop %v1035
    %v1040 = vsel %vm310, %v894, 0
    %1042 = vmatprep.subr.mxu0 0.0
    %1043 = vmatpush1.msra.mxu0 %v289
    %1044 = vmatprep.subr.mxu0 0.0
    %1045 = vmatpush1.msra.mxu0 %v290
    %1046 = vmatprep.subr.mxu0 0.0
    %1047 = vmatpush1.msra.mxu0 %v291
    %1048 = vmatprep.subr.mxu0 0.0
    %1049 = vmatpush1.msra.mxu0 %v292
    %1050 = vmatprep.subr.mxu0 0.0
    %1051 = vmatpush1.msra.mxu0 0.0
    %1052 = vmatprep.subr.mxu0 0.0
    %1053 = vmatpush1.msra.mxu0 0.0
    %1054 = vmatprep.subr.mxu0 0.0
    %1055 = vmatpush1.msra.mxu0 0.0
    %1056 = vmatprep.subr.mxu0 0.0
    %1057 = vmatpush1.msra.mxu0 0.0
    %1058 = vmatprep.subr.mxu0 0.0
    %1059 = vmatpush1.msra.mxu0 0.0
    %1060 = vmatprep.subr.mxu0 0.0
    %1061 = vmatpush1.msra.mxu0 0.0
    %1062 = vmatprep.subr.mxu0 0.0
    %1063 = vmatpush1.msra.mxu0 0.0
    %1064 = vmatprep.subr.mxu0 0.0
    %1065 = vmatpush1.msra.mxu0 0.0
    %1066 = vmatprep.subr.mxu0 0.0
    %1067 = vmatpush1.msra.mxu0 0.0
    %1068 = vmatprep.subr.mxu0 0.0
    %1069 = vmatpush1.msra.mxu0 0.0
    %1070 = vmatprep.subr.mxu0 0.0
    %1071 = vmatpush1.msra.mxu0 0.0
    %1072 = vmatprep.subr.mxu0 0.0
    %1073 = vmatpush1.msra.mxu0 0.0
    %1074 = vmatprep.subr.mxu0 0.0
    %1075 = vmatpush1.msra.mxu0 0.0
    %1076 = vmatprep.subr.mxu0 0.0
    %1077 = vmatpush1.msra.mxu0 0.0
    %1078 = vmatprep.subr.mxu0 0.0
    %1079 = vmatpush1.msra.mxu0 0.0
    %1080 = vmatprep.subr.mxu0 0.0
    %1081 = vmatpush1.msra.mxu0 0.0
    %1082 = vmatprep.subr.mxu0 0.0
    %1083 = vmatpush1.msra.mxu0 0.0
    %1084 = vmatprep.subr.mxu0 0.0
    %1085 = vmatpush1.msra.mxu0 0.0
    %1086 = vmatprep.subr.mxu0 0.0
    %1087 = vmatpush1.msra.mxu0 0.0
    %1088 = vmatprep.subr.mxu0 0.0
    %1089 = vmatpush1.msra.mxu0 0.0
    %1090 = vmatprep.subr.mxu0 0.0
    %1091 = vmatpush1.msra.mxu0 0.0
    %1092 = vmatprep.subr.mxu0 0.0
    %1093 = vmatpush1.msra.mxu0 0.0
    %1094 = vmatprep.subr.mxu0 0.0
    %1095 = vmatpush1.msra.mxu0 0.0
    %1096 = vmatprep.subr.mxu0 0.0
    %1097 = vmatpush1.msra.mxu0 0.0
    %1098 = vmatprep.subr.mxu0 0.0
    %1099 = vmatpush1.msra.mxu0 0.0
    %1100 = vmatprep.subr.mxu0 0.0
    %1101 = vmatpush1.msra.mxu0 0.0
    %1102 = vmatprep.subr.mxu0 0.0
    %1103 = vmatpush1.msra.mxu0 0.0
    %1104 = vmatprep.subr.mxu0 0.0
    %1105 = vmatpush1.msra.mxu0 0.0
    %1106 = vmatprep.mubr.f32.mxu0 0.0
    %1107 = vmatmul.mubr.f32.gmra.mrb[0].mxu0 %v1040
    %v1108 = vpop.f32.mrb[0].mxu0
    %v1109 = vadd.f32 %v271, %v1108
    %v1110 = vpop.f32.mrb[0].mxu0
    %1111 = vdwg.mxu0
    %v1112 = vtanh.pop %v1109
    %1113 = vmatprep.subr.mxu0 0.0
    %1114 = vmatpush1.msra.mxu0 %v297
    %1115 = vmatprep.subr.mxu0 0.0
    %1116 = vmatpush1.msra.mxu0 %v298
    %1117 = vmatprep.subr.mxu0 0.0
    %1118 = vmatpush1.msra.mxu0 %v299
    %1119 = vmatprep.subr.mxu0 0.0
    %1120 = vmatpush1.msra.mxu0 %v300
    %1121 = vmatprep.subr.mxu0 0.0
    %1122 = vmatpush1.msra.mxu0 0.0
    %1123 = vmatprep.subr.mxu0 0.0
    %1124 = vmatpush1.msra.mxu0 0.0
    %1125 = vmatprep.subr.mxu0 0.0
    %1126 = vmatpush1.msra.mxu0 0.0
    %1127 = vmatprep.subr.mxu0 0.0
    %1128 = vmatpush1.msra.mxu0 0.0
    %1129 = vmatprep.subr.mxu0 0.0
    %1130 = vmatpush1.msra.mxu0 0.0
    %1131 = vmatprep.subr.mxu0 0.0
    %1132 = vmatpush1.msra.mxu0 0.0
    %1133 = vmatprep.subr.mxu0 0.0
    %1134 = vmatpush1.msra.mxu0 0.0
    %1135 = vmatprep.subr.mxu0 0.0
    %1136 = vmatpush1.msra.mxu0 0.0
    %1137 = vmatprep.subr.mxu0 0.0
    %1138 = vmatpush1.msra.mxu0 0.0
    %1139 = vmatprep.subr.mxu0 0.0
    %1140 = vmatpush1.msra.mxu0 0.0
    %1141 = vmatprep.subr.mxu0 0.0
    %1142 = vmatpush1.msra.mxu0 0.0
    %1143 = vmatprep.subr.mxu0 0.0
    %1144 = vmatpush1.msra.mxu0 0.0
    %1145 = vmatprep.subr.mxu0 0.0
    %1146 = vmatpush1.msra.mxu0 0.0
    %1147 = vmatprep.subr.mxu0 0.0
    %1148 = vmatpush1.msra.mxu0 0.0
    %1149 = vmatprep.subr.mxu0 0.0
    %1150 = vmatpush1.msra.mxu0 0.0
    %1151 = vmatprep.subr.mxu0 0.0
    %1152 = vmatpush1.msra.mxu0 0.0
    %1153 = vmatprep.subr.mxu0 0.0
    %1154 = vmatpush1.msra.mxu0 0.0
    %1155 = vmatprep.subr.mxu0 0.0
    %1156 = vmatpush1.msra.mxu0 0.0
    %1157 = vmatprep.subr.mxu0 0.0
    %1158 = vmatpush1.msra.mxu0 0.0
    %1159 = vmatprep.subr.mxu0 0.0
    %1160 = vmatpush1.msra.mxu0 0.0
    %1161 = vmatprep.subr.mxu0 0.0
    %1162 = vmatpush1.msra.mxu0 0.0
    %1163 = vmatprep.subr.mxu0 0.0
    %1164 = vmatpush1.msra.mxu0 0.0
    %1165 = vmatprep.subr.mxu0 0.0
    %1166 = vmatpush1.msra.mxu0 0.0
    %1167 = vmatprep.subr.mxu0 0.0
    %1168 = vmatpush1.msra.mxu0 0.0
    %1169 = vmatprep.subr.mxu0 0.0
    %1170 = vmatpush1.msra.mxu0 0.0
    %1171 = vmatprep.subr.mxu0 0.0
    %1172 = vmatpush1.msra.mxu0 0.0
    %1173 = vmatprep.subr.mxu0 0.0
    %1174 = vmatpush1.msra.mxu0 0.0
    %1175 = vmatprep.subr.mxu0 0.0
    %1176 = vmatpush1.msra.mxu0 0.0
    %1177 = vmatprep.mubr.f32.mxu0 0.0
    %1178 = vmatmul.mubr.f32.gmra.mrb[0].mxu0 %v1040
    %v1179 = vpop.f32.mrb[0].mxu0
    %v1180 = vadd.f32 %v306, %v1179
    %v1181 = vpop.f32.mrb[0].mxu0
    %1182 = vdwg.mxu0
    %v1184 = vsel %vm310, %v1038, 0
    %1186 = vmatprep.subr.mxu0 0.0
    %1187 = vmatpush1.msra.mxu0 %v293
    %1188 = vmatprep.subr.mxu0 0.0
    %1189 = vmatpush1.msra.mxu0 %v294
    %1190 = vmatprep.subr.mxu0 0.0
    %1191 = vmatpush1.msra.mxu0 %v295
    %1192 = vmatprep.subr.mxu0 0.0
    %1193 = vmatpush1.msra.mxu0 %v296
    %1194 = vmatprep.subr.mxu0 0.0
    %1195 = vmatpush1.msra.mxu0 0.0
    %1196 = vmatprep.subr.mxu0 0.0
    %1197 = vmatpush1.msra.mxu0 0.0
    %1198 = vmatprep.subr.mxu0 0.0
    %1199 = vmatpush1.msra.mxu0 0.0
    %1200 = vmatprep.subr.mxu0 0.0
    %1201 = vmatpush1.msra.mxu0 0.0
    %1202 = vmatprep.subr.mxu0 0.0
    %1203 = vmatpush1.msra.mxu0 0.0
    %1204 = vmatprep.subr.mxu0 0.0
    %1205 = vmatpush1.msra.mxu0 0.0
    %1206 = vmatprep.subr.mxu0 0.0
    %1207 = vmatpush1.msra.mxu0 0.0
    %1208 = vmatprep.subr.mxu0 0.0
    %1209 = vmatpush1.msra.mxu0 0.0
    %1210 = vmatprep.subr.mxu0 0.0
    %1211 = vmatpush1.msra.mxu0 0.0
    %1212 = vmatprep.subr.mxu0 0.0
    %1213 = vmatpush1.msra.mxu0 0.0
    %1214 = vmatprep.subr.mxu0 0.0
    %1215 = vmatpush1.msra.mxu0 0.0
    %1216 = vmatprep.subr.mxu0 0.0
    %1217 = vmatpush1.msra.mxu0 0.0
    %1218 = vmatprep.subr.mxu0 0.0
    %1219 = vmatpush1.msra.mxu0 0.0
    %1220 = vmatprep.subr.mxu0 0.0
    %1221 = vmatpush1.msra.mxu0 0.0
    %1222 = vmatprep.subr.mxu0 0.0
    %1223 = vmatpush1.msra.mxu0 0.0
    %1224 = vmatprep.subr.mxu0 0.0
    %1225 = vmatpush1.msra.mxu0 0.0
    %1226 = vmatprep.subr.mxu0 0.0
    %1227 = vmatpush1.msra.mxu0 0.0
    %1228 = vmatprep.subr.mxu0 0.0
    %1229 = vmatpush1.msra.mxu0 0.0
    %1230 = vmatprep.subr.mxu0 0.0
    %1231 = vmatpush1.msra.mxu0 0.0
    %1232 = vmatprep.subr.mxu0 0.0
    %1233 = vmatpush1.msra.mxu0 0.0
    %1234 = vmatprep.subr.mxu0 0.0
    %1235 = vmatpush1.msra.mxu0 0.0
    %1236 = vmatprep.subr.mxu0 0.0
    %1237 = vmatpush1.msra.mxu0 0.0
    %1238 = vmatprep.subr.mxu0 0.0
    %1239 = vmatpush1.msra.mxu0 0.0
    %1240 = vmatprep.subr.mxu0 0.0
    %1241 = vmatpush1.msra.mxu0 0.0
    %1242 = vmatprep.subr.mxu0 0.0
    %1243 = vmatpush1.msra.mxu0 0.0
    %1244 = vmatprep.subr.mxu0 0.0
    %1245 = vmatpush1.msra.mxu0 0.0
    %1246 = vmatprep.subr.mxu0 0.0
    %1247 = vmatpush1.msra.mxu0 0.0
    %1248 = vmatprep.subr.mxu0 0.0
    %1249 = vmatpush1.msra.mxu0 0.0
    %1250 = vmatprep.mubr.f32.mxu0 0.0
    %1251 = vmatmul.mubr.f32.gmra.mrb[0].mxu0 %v1184
    %v1252 = vpop.f32.mrb[0].mxu0
    %v1253 = vadd.f32 %v1180, %v1252
    %v1254 = vpop.f32.mrb[0].mxu0
    %1255 = vdwg.mxu0
    %v1256 = vtanh.pop %v1253
    %v1258 = vsel %vm310, %v1112, 0
    %1260 = vmatprep.subr.mxu0 0.0
    %1261 = vmatpush1.msra.mxu0 %v289
    %1262 = vmatprep.subr.mxu0 0.0
    %1263 = vmatpush1.msra.mxu0 %v290
    %1264 = vmatprep.subr.mxu0 0.0
    %1265 = vmatpush1.msra.mxu0 %v291
    %1266 = vmatprep.subr.mxu0 0.0
    %1267 = vmatpush1.msra.mxu0 %v292
    %1268 = vmatprep.subr.mxu0 0.0
    %1269 = vmatpush1.msra.mxu0 0.0
    %1270 = vmatprep.subr.mxu0 0.0
    %1271 = vmatpush1.msra.mxu0 0.0
    %1272 = vmatprep.subr.mxu0 0.0
    %1273 = vmatpush1.msra.mxu0 0.0
    %1274 = vmatprep.subr.mxu0 0.0
    %1275 = vmatpush1.msra.mxu0 0.0
    %1276 = vmatprep.subr.mxu0 0.0
    %1277 = vmatpush1.msra.mxu0 0.0
    %1278 = vmatprep.subr.mxu0 0.0
    %1279 = vmatpush1.msra.mxu0 0.0
    %1280 = vmatprep.subr.mxu0 0.0
    %1281 = vmatpush1.msra.mxu0 0.0
    %1282 = vmatprep.subr.mxu0 0.0
    %1283 = vmatpush1.msra.mxu0 0.0
    %1284 = vmatprep.subr.mxu0 0.0
    %1285 = vmatpush1.msra.mxu0 0.0
    %1286 = vmatprep.subr.mxu0 0.0
    %1287 = vmatpush1.msra.mxu0 0.0
    %1288 = vmatprep.subr.mxu0 0.0
    %1289 = vmatpush1.msra.mxu0 0.0
    %1290 = vmatprep.subr.mxu0 0.0
    %1291 = vmatpush1.msra.mxu0 0.0
    %1292 = vmatprep.subr.mxu0 0.0
    %1293 = vmatpush1.msra.mxu0 0.0
    %1294 = vmatprep.subr.mxu0 0.0
    %1295 = vmatpush1.msra.mxu0 0.0
    %1296 = vmatprep.subr.mxu0 0.0
    %1297 = vmatpush1.msra.mxu0 0.0
    %1298 = vmatprep.subr.mxu0 0.0
    %1299 = vmatpush1.msra.mxu0 0.0
    %1300 = vmatprep.subr.mxu0 0.0
    %1301 = vmatpush1.msra.mxu0 0.0
    %1302 = vmatprep.subr.mxu0 0.0
    %1303 = vmatpush1.msra.mxu0 0.0
    %1304 = vmatprep.subr.mxu0 0.0
    %1305 = vmatpush1.msra.mxu0 0.0
    %1306 = vmatprep.subr.mxu0 0.0
    %1307 = vmatpush1.msra.mxu0 0.0
    %1308 = vmatprep.subr.mxu0 0.0
    %1309 = vmatpush1.msra.mxu0 0.0
    %1310 = vmatprep.subr.mxu0 0.0
    %1311 = vmatpush1.msra.mxu0 0.0
    %1312 = vmatprep.subr.mxu0 0.0
    %1313 = vmatpush1.msra.mxu0 0.0
    %1314 = vmatprep.subr.mxu0 0.0
    %1315 = vmatpush1.msra.mxu0 0.0
    %1316 = vmatprep.subr.mxu0 0.0
    %1317 = vmatpush1.msra.mxu0 0.0
    %1318 = vmatprep.subr.mxu0 0.0
    %1319 = vmatpush1.msra.mxu0 0.0
    %1320 = vmatprep.subr.mxu0 0.0
    %1321 = vmatpush1.msra.mxu0 0.0
    %1322 = vmatprep.subr.mxu0 0.0
    %1323 = vmatpush1.msra.mxu0 0.0
    %1324 = vmatprep.mubr.f32.mxu0 0.0
    %1325 = vmatmul.mubr.f32.gmra.mrb[0].mxu0 %v1258
    %v1326 = vpop.f32.mrb[0].mxu0
    %v1327 = vadd.f32 %v276, %v1326
    %v1328 = vpop.f32.mrb[0].mxu0
    %1329 = vdwg.mxu0
    %v1330 = vtanh.pop %v1327
    %1331 = vmatprep.subr.mxu0 0.0
    %1332 = vmatpush1.msra.mxu0 %v297
    %1333 = vmatprep.subr.mxu0 0.0
    %1334 = vmatpush1.msra.mxu0 %v298
    %1335 = vmatprep.subr.mxu0 0.0
    %1336 = vmatpush1.msra.mxu0 %v299
    %1337 = vmatprep.subr.mxu0 0.0
    %1338 = vmatpush1.msra.mxu0 %v300
    %1339 = vmatprep.subr.mxu0 0.0
    %1340 = vmatpush1.msra.mxu0 0.0
    %1341 = vmatprep.subr.mxu0 0.0
    %1342 = vmatpush1.msra.mxu0 0.0
    %1343 = vmatprep.subr.mxu0 0.0
    %1344 = vmatpush1.msra.mxu0 0.0
    %1345 = vmatprep.subr.mxu0 0.0
    %1346 = vmatpush1.msra.mxu0 0.0
    %1347 = vmatprep.subr.mxu0 0.0
    %1348 = vmatpush1.msra.mxu0 0.0
    %1349 = vmatprep.subr.mxu0 0.0
    %1350 = vmatpush1.msra.mxu0 0.0
    %1351 = vmatprep.subr.mxu0 0.0
    %1352 = vmatpush1.msra.mxu0 0.0
    %1353 = vmatprep.subr.mxu0 0.0
    %1354 = vmatpush1.msra.mxu0 0.0
    %1355 = vmatprep.subr.mxu0 0.0
    %1356 = vmatpush1.msra.mxu0 0.0
    %1357 = vmatprep.subr.mxu0 0.0
    %1358 = vmatpush1.msra.mxu0 0.0
    %1359 = vmatprep.subr.mxu0 0.0
    %1360 = vmatpush1.msra.mxu0 0.0
    %1361 = vmatprep.subr.mxu0 0.0
    %1362 = vmatpush1.msra.mxu0 0.0
    %1363 = vmatprep.subr.mxu0 0.0
    %1364 = vmatpush1.msra.mxu0 0.0
    %1365 = vmatprep.subr.mxu0 0.0
    %1366 = vmatpush1.msra.mxu0 0.0
    %1367 = vmatprep.subr.mxu0 0.0
    %1368 = vmatpush1.msra.mxu0 0.0
    %1369 = vmatprep.subr.mxu0 0.0
    %1370 = vmatpush1.msra.mxu0 0.0
    %1371 = vmatprep.subr.mxu0 0.0
    %1372 = vmatpush1.msra.mxu0 0.0
    %1373 = vmatprep.subr.mxu0 0.0
    %1374 = vmatpush1.msra.mxu0 0.0
    %1375 = vmatprep.subr.mxu0 0.0
    %1376 = vmatpush1.msra.mxu0 0.0
    %1377 = vmatprep.subr.mxu0 0.0
    %1378 = vmatpush1.msra.mxu0 0.0
    %1379 = vmatprep.subr.mxu0 0.0
    %1380 = vmatpush1.msra.mxu0 0.0
    %1381 = vmatprep.subr.mxu0 0.0
    %1382 = vmatpush1.msra.mxu0 0.0
    %1383 = vmatprep.subr.mxu0 0.0
    %1384 = vmatpush1.msra.mxu0 0.0
    %1385 = vmatprep.subr.mxu0 0.0
    %1386 = vmatpush1.msra.mxu0 0.0
    %1387 = vmatprep.subr.mxu0 0.0
    %1388 = vmatpush1.msra.mxu0 0.0
    %1389 = vmatprep.subr.mxu0 0.0
    %1390 = vmatpush1.msra.mxu0 0.0
    %1391 = vmatprep.subr.mxu0 0.0
    %1392 = vmatpush1.msra.mxu0 0.0
    %1393 = vmatprep.subr.mxu0 0.0
    %1394 = vmatpush1.msra.mxu0 0.0
    %1395 = vmatprep.mubr.f32.mxu0 0.0
    %1396 = vmatmul.mubr.f32.gmra.mrb[0].mxu0 %v1258
    %v1397 = vpop.f32.mrb[0].mxu0
    %v1398 = vadd.f32 %v306, %v1397
    %v1399 = vpop.f32.mrb[0].mxu0
    %1400 = vdwg.mxu0
    %v1402 = vsel %vm310, %v1256, 0
    %1404 = vmatprep.subr.mxu0 0.0
    %1405 = vmatpush1.msra.mxu0 %v293
    %1406 = vmatprep.subr.mxu0 0.0
    %1407 = vmatpush1.msra.mxu0 %v294
    %1408 = vmatprep.subr.mxu0 0.0
    %1409 = vmatpush1.msra.mxu0 %v295
    %1410 = vmatprep.subr.mxu0 0.0
    %1411 = vmatpush1.msra.mxu0 %v296
    %1412 = vmatprep.subr.mxu0 0.0
    %1413 = vmatpush1.msra.mxu0 0.0
    %1414 = vmatprep.subr.mxu0 0.0
    %1415 = vmatpush1.msra.mxu0 0.0
    %1416 = vmatprep.subr.mxu0 0.0
    %1417 = vmatpush1.msra.mxu0 0.0
    %1418 = vmatprep.subr.mxu0 0.0
    %1419 = vmatpush1.msra.mxu0 0.0
    %1420 = vmatprep.subr.mxu0 0.0
    %1421 = vmatpush1.msra.mxu0 0.0
    %1422 = vmatprep.subr.mxu0 0.0
    %1423 = vmatpush1.msra.mxu0 0.0
    %1424 = vmatprep.subr.mxu0 0.0
    %1425 = vmatpush1.msra.mxu0 0.0
    %1426 = vmatprep.subr.mxu0 0.0
    %1427 = vmatpush1.msra.mxu0 0.0
    %1428 = vmatprep.subr.mxu0 0.0
    %1429 = vmatpush1.msra.mxu0 0.0
    %1430 = vmatprep.subr.mxu0 0.0
    %1431 = vmatpush1.msra.mxu0 0.0
    %1432 = vmatprep.subr.mxu0 0.0
    %1433 = vmatpush1.msra.mxu0 0.0
    %1434 = vmatprep.subr.mxu0 0.0
    %1435 = vmatpush1.msra.mxu0 0.0
    %1436 = vmatprep.subr.mxu0 0.0
    %1437 = vmatpush1.msra.mxu0 0.0
    %1438 = vmatprep.subr.mxu0 0.0
    %1439 = vmatpush1.msra.mxu0 0.0
    %1440 = vmatprep.subr.mxu0 0.0
    %1441 = vmatpush1.msra.mxu0 0.0
    %1442 = vmatprep.subr.mxu0 0.0
    %1443 = vmatpush1.msra.mxu0 0.0
    %1444 = vmatprep.subr.mxu0 0.0
    %1445 = vmatpush1.msra.mxu0 0.0
    %1446 = vmatprep.subr.mxu0 0.0
    %1447 = vmatpush1.msra.mxu0 0.0
    %1448 = vmatprep.subr.mxu0 0.0
    %1449 = vmatpush1.msra.mxu0 0.0
    %1450 = vmatprep.subr.mxu0 0.0
    %1451 = vmatpush1.msra.mxu0 0.0
    %1452 = vmatprep.subr.mxu0 0.0
    %1453 = vmatpush1.msra.mxu0 0.0
    %1454 = vmatprep.subr.mxu0 0.0
    %1455 = vmatpush1.msra.mxu0 0.0
    %1456 = vmatprep.subr.mxu0 0.0
    %1457 = vmatpush1.msra.mxu0 0.0
    %1458 = vmatprep.subr.mxu0 0.0
    %1459 = vmatpush1.msra.mxu0 0.0
    %1460 = vmatprep.subr.mxu0 0.0
    %1461 = vmatpush1.msra.mxu0 0.0
    %1462 = vmatprep.subr.mxu0 0.0
    %1463 = vmatpush1.msra.mxu0 0.0
    %1464 = vmatprep.subr.mxu0 0.0
    %1465 = vmatpush1.msra.mxu0 0.0
    %1466 = vmatprep.subr.mxu0 0.0
    %1467 = vmatpush1.msra.mxu0 0.0
    %1468 = vmatprep.mubr.f32.mxu0 0.0
    %1469 = vmatmul.mubr.f32.gmra.mrb[0].mxu0 %v1402
    %v1470 = vpop.f32.mrb[0].mxu0
    %v1471 = vadd.f32 %v1398, %v1470
    %v1472 = vpop.f32.mrb[0].mxu0
    %1473 = vdwg.mxu0
    %v1474 = vtanh.pop %v1471
    %v1476 = vsel %vm310, %v1330, 0
    %1478 = vmatprep.subr.mxu0 0.0
    %1479 = vmatpush1.msra.mxu0 %v289
    %1480 = vmatprep.subr.mxu0 0.0
    %1481 = vmatpush1.msra.mxu0 %v290
    %1482 = vmatprep.subr.mxu0 0.0
    %1483 = vmatpush1.msra.mxu0 %v291
    %1484 = vmatprep.subr.mxu0 0.0
    %1485 = vmatpush1.msra.mxu0 %v292
    %1486 = vmatprep.subr.mxu0 0.0
    %1487 = vmatpush1.msra.mxu0 0.0
    %1488 = vmatprep.subr.mxu0 0.0
    %1489 = vmatpush1.msra.mxu0 0.0
    %1490 = vmatprep.subr.mxu0 0.0
    %1491 = vmatpush1.msra.mxu0 0.0
    %1492 = vmatprep.subr.mxu0 0.0
    %1493 = vmatpush1.msra.mxu0 0.0
    %1494 = vmatprep.subr.mxu0 0.0
    %1495 = vmatpush1.msra.mxu0 0.0
    %1496 = vmatprep.subr.mxu0 0.0
    %1497 = vmatpush1.msra.mxu0 0.0
    %1498 = vmatprep.subr.mxu0 0.0
    %1499 = vmatpush1.msra.mxu0 0.0
    %1500 = vmatprep.subr.mxu0 0.0
    %1501 = vmatpush1.msra.mxu0 0.0
    %1502 = vmatprep.subr.mxu0 0.0
    %1503 = vmatpush1.msra.mxu0 0.0
    %1504 = vmatprep.subr.mxu0 0.0
    %1505 = vmatpush1.msra.mxu0 0.0
    %1506 = vmatprep.subr.mxu0 0.0
    %1507 = vmatpush1.msra.mxu0 0.0
    %1508 = vmatprep.subr.mxu0 0.0
    %1509 = vmatpush1.msra.mxu0 0.0
    %1510 = vmatprep.subr.mxu0 0.0
    %1511 = vmatpush1.msra.mxu0 0.0
    %1512 = vmatprep.subr.mxu0 0.0
    %1513 = vmatpush1.msra.mxu0 0.0
    %1514 = vmatprep.subr.mxu0 0.0
    %1515 = vmatpush1.msra.mxu0 0.0
    %1516 = vmatprep.subr.mxu0 0.0
    %1517 = vmatpush1.msra.mxu0 0.0
    %1518 = vmatprep.subr.mxu0 0.0
    %1519 = vmatpush1.msra.mxu0 0.0
    %1520 = vmatprep.subr.mxu0 0.0
    %1521 = vmatpush1.msra.mxu0 0.0
    %1522 = vmatprep.subr.mxu0 0.0
    %1523 = vmatpush1.msra.mxu0 0.0
    %1524 = vmatprep.subr.mxu0 0.0
    %1525 = vmatpush1.msra.mxu0 0.0
    %1526 = vmatprep.subr.mxu0 0.0
    %1527 = vmatpush1.msra.mxu0 0.0
    %1528 = vmatprep.subr.mxu0 0.0
    %1529 = vmatpush1.msra.mxu0 0.0
    %1530 = vmatprep.subr.mxu0 0.0
    %1531 = vmatpush1.msra.mxu0 0.0
    %1532 = vmatprep.subr.mxu0 0.0
    %1533 = vmatpush1.msra.mxu0 0.0
    %1534 = vmatprep.subr.mxu0 0.0
    %1535 = vmatpush1.msra.mxu0 0.0
    %1536 = vmatprep.subr.mxu0 0.0
    %1537 = vmatpush1.msra.mxu0 0.0
    %1538 = vmatprep.subr.mxu0 0.0
    %1539 = vmatpush1.msra.mxu0 0.0
    %1540 = vmatprep.subr.mxu0 0.0
    %1541 = vmatpush1.msra.mxu0 0.0
    %1542 = vmatprep.mubr.f32.mxu0 0.0
    %1543 = vmatmul.mubr.f32.gmra.mrb[0].mxu0 %v1476
    %v1544 = vpop.f32.mrb[0].mxu0
    %v1545 = vadd.f32 %v281, %v1544
    %v1546 = vpop.f32.mrb[0].mxu0
    %1547 = vdwg.mxu0
    %v1548 = vtanh.pop %v1545
    %1549 = vmatprep.subr.mxu0 0.0
    %1550 = vmatpush1.msra.mxu0 %v297
    %1551 = vmatprep.subr.mxu0 0.0
    %1552 = vmatpush1.msra.mxu0 %v298
    %1553 = vmatprep.subr.mxu0 0.0
    %1554 = vmatpush1.msra.mxu0 %v299
    %1555 = vmatprep.subr.mxu0 0.0
    %1556 = vmatpush1.msra.mxu0 %v300
    %1557 = vmatprep.subr.mxu0 0.0
    %1558 = vmatpush1.msra.mxu0 0.0
    %1559 = vmatprep.subr.mxu0 0.0
    %1560 = vmatpush1.msra.mxu0 0.0
    %1561 = vmatprep.subr.mxu0 0.0
    %1562 = vmatpush1.msra.mxu0 0.0
    %1563 = vmatprep.subr.mxu0 0.0
    %1564 = vmatpush1.msra.mxu0 0.0
    %1565 = vmatprep.subr.mxu0 0.0
    %1566 = vmatpush1.msra.mxu0 0.0
    %1567 = vmatprep.subr.mxu0 0.0
    %1568 = vmatpush1.msra.mxu0 0.0
    %1569 = vmatprep.subr.mxu0 0.0
    %1570 = vmatpush1.msra.mxu0 0.0
    %1571 = vmatprep.subr.mxu0 0.0
    %1572 = vmatpush1.msra.mxu0 0.0
    %1573 = vmatprep.subr.mxu0 0.0
    %1574 = vmatpush1.msra.mxu0 0.0
    %1575 = vmatprep.subr.mxu0 0.0
    %1576 = vmatpush1.msra.mxu0 0.0
    %1577 = vmatprep.subr.mxu0 0.0
    %1578 = vmatpush1.msra.mxu0 0.0
    %1579 = vmatprep.subr.mxu0 0.0
    %1580 = vmatpush1.msra.mxu0 0.0
    %1581 = vmatprep.subr.mxu0 0.0
    %1582 = vmatpush1.msra.mxu0 0.0
    %1583 = vmatprep.subr.mxu0 0.0
    %1584 = vmatpush1.msra.mxu0 0.0
    %1585 = vmatprep.subr.mxu0 0.0
    %1586 = vmatpush1.msra.mxu0 0.0
    %1587 = vmatprep.subr.mxu0 0.0
    %1588 = vmatpush1.msra.mxu0 0.0
    %1589 = vmatprep.subr.mxu0 0.0
    %1590 = vmatpush1.msra.mxu0 0.0
    %1591 = vmatprep.subr.mxu0 0.0
    %1592 = vmatpush1.msra.mxu0 0.0
    %1593 = vmatprep.subr.mxu0 0.0
    %1594 = vmatpush1.msra.mxu0 0.0
    %1595 = vmatprep.subr.mxu0 0.0
    %1596 = vmatpush1.msra.mxu0 0.0
    %1597 = vmatprep.subr.mxu0 0.0
    %1598 = vmatpush1.msra.mxu0 0.0
    %1599 = vmatprep.subr.mxu0 0.0
    %1600 = vmatpush1.msra.mxu0 0.0
    %1601 = vmatprep.subr.mxu0 0.0
    %1602 = vmatpush1.msra.mxu0 0.0
    %1603 = vmatprep.subr.mxu0 0.0
    %1604 = vmatpush1.msra.mxu0 0.0
    %1605 = vmatprep.subr.mxu0 0.0
    %1606 = vmatpush1.msra.mxu0 0.0
    %1607 = vmatprep.subr.mxu0 0.0
    %1608 = vmatpush1.msra.mxu0 0.0
    %1609 = vmatprep.subr.mxu0 0.0
    %1610 = vmatpush1.msra.mxu0 0.0
    %1611 = vmatprep.subr.mxu0 0.0
    %1612 = vmatpush1.msra.mxu0 0.0
    %1613 = vmatprep.mubr.f32.mxu0 0.0
    %1614 = vmatmul.mubr.f32.gmra.mrb[0].mxu0 %v1476
    %v1615 = vpop.f32.mrb[0].mxu0
    %v1616 = vadd.f32 %v306, %v1615
    %v1617 = vpop.f32.mrb[0].mxu0
    %1618 = vdwg.mxu0
    %v1620 = vsel %vm310, %v1474, 0
    %1622 = vmatprep.subr.mxu0 0.0
    %1623 = vmatpush1.msra.mxu0 %v293
    %1624 = vmatprep.subr.mxu0 0.0
    %1625 = vmatpush1.msra.mxu0 %v294
    %1626 = vmatprep.subr.mxu0 0.0
    %1627 = vmatpush1.msra.mxu0 %v295
    %1628 = vmatprep.subr.mxu0 0.0
    %1629 = vmatpush1.msra.mxu0 %v296
    %1630 = vmatprep.subr.mxu0 0.0
    %1631 = vmatpush1.msra.mxu0 0.0
    %1632 = vmatprep.subr.mxu0 0.0
    %1633 = vmatpush1.msra.mxu0 0.0
    %1634 = vmatprep.subr.mxu0 0.0
    %1635 = vmatpush1.msra.mxu0 0.0
    %1636 = vmatprep.subr.mxu0 0.0
    %1637 = vmatpush1.msra.mxu0 0.0
    %1638 = vmatprep.subr.mxu0 0.0
    %1639 = vmatpush1.msra.mxu0 0.0
    %1640 = vmatprep.subr.mxu0 0.0
    %1641 = vmatpush1.msra.mxu0 0.0
    %1642 = vmatprep.subr.mxu0 0.0
    %1643 = vmatpush1.msra.mxu0 0.0
    %1644 = vmatprep.subr.mxu0 0.0
    %1645 = vmatpush1.msra.mxu0 0.0
    %1646 = vmatprep.subr.mxu0 0.0
    %1647 = vmatpush1.msra.mxu0 0.0
    %1648 = vmatprep.subr.mxu0 0.0
    %1649 = vmatpush1.msra.mxu0 0.0
    %1650 = vmatprep.subr.mxu0 0.0
    %1651 = vmatpush1.msra.mxu0 0.0
    %1652 = vmatprep.subr.mxu0 0.0
    %1653 = vmatpush1.msra.mxu0 0.0
    %1654 = vmatprep.subr.mxu0 0.0
    %1655 = vmatpush1.msra.mxu0 0.0
    %1656 = vmatprep.subr.mxu0 0.0
    %1657 = vmatpush1.msra.mxu0 0.0
    %1658 = vmatprep.subr.mxu0 0.0
    %1659 = vmatpush1.msra.mxu0 0.0
    %1660 = vmatprep.subr.mxu0 0.0
    %1661 = vmatpush1.msra.mxu0 0.0
    %1662 = vmatprep.subr.mxu0 0.0
    %1663 = vmatpush1.msra.mxu0 0.0
    %1664 = vmatprep.subr.mxu0 0.0
    %1665 = vmatpush1.msra.mxu0 0.0
    %1666 = vmatprep.subr.mxu0 0.0
    %1667 = vmatpush1.msra.mxu0 0.0
    %1668 = vmatprep.subr.mxu0 0.0
    %1669 = vmatpush1.msra.mxu0 0.0
    %1670 = vmatprep.subr.mxu0 0.0
    %1671 = vmatpush1.msra.mxu0 0.0
    %1672 = vmatprep.subr.mxu0 0.0
    %1673 = vmatpush1.msra.mxu0 0.0
    %1674 = vmatprep.subr.mxu0 0.0
    %1675 = vmatpush1.msra.mxu0 0.0
    %1676 = vmatprep.subr.mxu0 0.0
    %1677 = vmatpush1.msra.mxu0 0.0
    %1678 = vmatprep.subr.mxu0 0.0
    %1679 = vmatpush1.msra.mxu0 0.0
    %1680 = vmatprep.subr.mxu0 0.0
    %1681 = vmatpush1.msra.mxu0 0.0
    %1682 = vmatprep.subr.mxu0 0.0
    %1683 = vmatpush1.msra.mxu0 0.0
    %1684 = vmatprep.subr.mxu0 0.0
    %1685 = vmatpush1.msra.mxu0 0.0
    %1686 = vmatprep.mubr.f32.mxu0 0.0
    %1687 = vmatmul.mubr.f32.gmra.mrb[0].mxu0 %v1620
    %v1688 = vpop.f32.mrb[0].mxu0
    %v1689 = vadd.f32 %v1616, %v1688
    %v1690 = vpop.f32.mrb[0].mxu0
    %1691 = vdwg.mxu0
    %v1692 = vtanh.pop %v1689
    %v1694 = vsel %vm310, %v1548, 0
    %1696 = vmatprep.subr.mxu0 0.0
    %1697 = vmatpush1.msra.mxu0 %v289
    %1698 = vmatprep.subr.mxu0 0.0
    %1699 = vmatpush1.msra.mxu0 %v290
    %1700 = vmatprep.subr.mxu0 0.0
    %1701 = vmatpush1.msra.mxu0 %v291
    %1702 = vmatprep.subr.mxu0 0.0
    %1703 = vmatpush1.msra.mxu0 %v292
    %1704 = vmatprep.subr.mxu0 0.0
    %1705 = vmatpush1.msra.mxu0 0.0
    %1706 = vmatprep.subr.mxu0 0.0
    %1707 = vmatpush1.msra.mxu0 0.0
    %1708 = vmatprep.subr.mxu0 0.0
    %1709 = vmatpush1.msra.mxu0 0.0
    %1710 = vmatprep.subr.mxu0 0.0
    %1711 = vmatpush1.msra.mxu0 0.0
    %1712 = vmatprep.subr.mxu0 0.0
    %1713 = vmatpush1.msra.mxu0 0.0
    %1714 = vmatprep.subr.mxu0 0.0
    %1715 = vmatpush1.msra.mxu0 0.0
    %1716 = vmatprep.subr.mxu0 0.0
    %1717 = vmatpush1.msra.mxu0 0.0
    %1718 = vmatprep.subr.mxu0 0.0
    %1719 = vmatpush1.msra.mxu0 0.0
    %1720 = vmatprep.subr.mxu0 0.0
    %1721 = vmatpush1.msra.mxu0 0.0
    %1722 = vmatprep.subr.mxu0 0.0
    %1723 = vmatpush1.msra.mxu0 0.0
    %1724 = vmatprep.subr.mxu0 0.0
    %1725 = vmatpush1.msra.mxu0 0.0
    %1726 = vmatprep.subr.mxu0 0.0
    %1727 = vmatpush1.msra.mxu0 0.0
    %1728 = vmatprep.subr.mxu0 0.0
    %1729 = vmatpush1.msra.mxu0 0.0
    %1730 = vmatprep.subr.mxu0 0.0
    %1731 = vmatpush1.msra.mxu0 0.0
    %1732 = vmatprep.subr.mxu0 0.0
    %1733 = vmatpush1.msra.mxu0 0.0
    %1734 = vmatprep.subr.mxu0 0.0
    %1735 = vmatpush1.msra.mxu0 0.0
    %1736 = vmatprep.subr.mxu0 0.0
    %1737 = vmatpush1.msra.mxu0 0.0
    %1738 = vmatprep.subr.mxu0 0.0
    %1739 = vmatpush1.msra.mxu0 0.0
    %1740 = vmatprep.subr.mxu0 0.0
    %1741 = vmatpush1.msra.mxu0 0.0
    %1742 = vmatprep.subr.mxu0 0.0
    %1743 = vmatpush1.msra.mxu0 0.0
    %1744 = vmatprep.subr.mxu0 0.0
    %1745 = vmatpush1.msra.mxu0 0.0
    %1746 = vmatprep.subr.mxu0 0.0
    %1747 = vmatpush1.msra.mxu0 0.0
    %1748 = vmatprep.subr.mxu0 0.0
    %1749 = vmatpush1.msra.mxu0 0.0
    %1750 = vmatprep.subr.mxu0 0.0
    %1751 = vmatpush1.msra.mxu0 0.0
    %1752 = vmatprep.subr.mxu0 0.0
    %1753 = vmatpush1.msra.mxu0 0.0
    %1754 = vmatprep.subr.mxu0 0.0
    %1755 = vmatpush1.msra.mxu0 0.0
    %1756 = vmatprep.subr.mxu0 0.0
    %1757 = vmatpush1.msra.mxu0 0.0
    %1758 = vmatprep.subr.mxu0 0.0
    %1759 = vmatpush1.msra.mxu0 0.0
    %1760 = vmatprep.mubr.f32.mxu0 0.0
    %1761 = vmatmul.mubr.f32.gmra.mrb[0].mxu0 %v1694
    %v1762 = vpop.f32.mrb[0].mxu0
    %v1763 = vadd.f32 %v286, %v1762
    %v1764 = vpop.f32.mrb[0].mxu0
    %1765 = vdwg.mxu0
    %v1766 = vtanh.pop %v1763
    %1767 = vmatprep.subr.mxu0 0.0
    %1768 = vmatpush1.msra.mxu0 %v297
    %1769 = vmatprep.subr.mxu0 0.0
    %1770 = vmatpush1.msra.mxu0 %v298
    %1771 = vmatprep.subr.mxu0 0.0
    %1772 = vmatpush1.msra.mxu0 %v299
    %1773 = vmatprep.subr.mxu0 0.0
    %1774 = vmatpush1.msra.mxu0 %v300
    %1775 = vmatprep.subr.mxu0 0.0
    %1776 = vmatpush1.msra.mxu0 0.0
    %1777 = vmatprep.subr.mxu0 0.0
    %1778 = vmatpush1.msra.mxu0 0.0
    %1779 = vmatprep.subr.mxu0 0.0
    %1780 = vmatpush1.msra.mxu0 0.0
    %1781 = vmatprep.subr.mxu0 0.0
    %1782 = vmatpush1.msra.mxu0 0.0
    %1783 = vmatprep.subr.mxu0 0.0
    %1784 = vmatpush1.msra.mxu0 0.0
    %1785 = vmatprep.subr.mxu0 0.0
    %1786 = vmatpush1.msra.mxu0 0.0
    %1787 = vmatprep.subr.mxu0 0.0
    %1788 = vmatpush1.msra.mxu0 0.0
    %1789 = vmatprep.subr.mxu0 0.0
    %1790 = vmatpush1.msra.mxu0 0.0
    %1791 = vmatprep.subr.mxu0 0.0
    %1792 = vmatpush1.msra.mxu0 0.0
    %1793 = vmatprep.subr.mxu0 0.0
    %1794 = vmatpush1.msra.mxu0 0.0
    %1795 = vmatprep.subr.mxu0 0.0
    %1796 = vmatpush1.msra.mxu0 0.0
    %1797 = vmatprep.subr.mxu0 0.0
    %1798 = vmatpush1.msra.mxu0 0.0
    %1799 = vmatprep.subr.mxu0 0.0
    %1800 = vmatpush1.msra.mxu0 0.0
    %1801 = vmatprep.subr.mxu0 0.0
    %1802 = vmatpush1.msra.mxu0 0.0
    %1803 = vmatprep.subr.mxu0 0.0
    %1804 = vmatpush1.msra.mxu0 0.0
    %1805 = vmatprep.subr.mxu0 0.0
    %1806 = vmatpush1.msra.mxu0 0.0
    %1807 = vmatprep.subr.mxu0 0.0
    %1808 = vmatpush1.msra.mxu0 0.0
    %1809 = vmatprep.subr.mxu0 0.0
    %1810 = vmatpush1.msra.mxu0 0.0
    %1811 = vmatprep.subr.mxu0 0.0
    %1812 = vmatpush1.msra.mxu0 0.0
    %1813 = vmatprep.subr.mxu0 0.0
    %1814 = vmatpush1.msra.mxu0 0.0
    %1815 = vmatprep.subr.mxu0 0.0
    %1816 = vmatpush1.msra.mxu0 0.0
    %1817 = vmatprep.subr.mxu0 0.0
    %1818 = vmatpush1.msra.mxu0 0.0
    %1819 = vmatprep.subr.mxu0 0.0
    %1820 = vmatpush1.msra.mxu0 0.0
    %1821 = vmatprep.subr.mxu0 0.0
    %1822 = vmatpush1.msra.mxu0 0.0
    %1823 = vmatprep.subr.mxu0 0.0
    %1824 = vmatpush1.msra.mxu0 0.0
    %1825 = vmatprep.subr.mxu0 0.0
    %1826 = vmatpush1.msra.mxu0 0.0
    %1827 = vmatprep.subr.mxu0 0.0
    %1828 = vmatpush1.msra.mxu0 0.0
    %1829 = vmatprep.subr.mxu0 0.0
    %1830 = vmatpush1.msra.mxu0 0.0
    %1831 = vmatprep.mubr.f32.mxu0 0.0
    %1832 = vmatmul.mubr.f32.gmra.mrb[0].mxu0 %v1694
    %v1833 = vpop.f32.mrb[0].mxu0
    %v1834 = vadd.f32 %v306, %v1833
    %v1835 = vpop.f32.mrb[0].mxu0
    %1836 = vdwg.mxu0
    %v1838 = vsel %vm310, %v1692, 0
    %1840 = vmatprep.subr.mxu0 0.0
    %1841 = vmatpush1.msra.mxu0 %v293
    %1842 = vmatprep.subr.mxu0 0.0
    %1843 = vmatpush1.msra.mxu0 %v294
    %1844 = vmatprep.subr.mxu0 0.0
    %1845 = vmatpush1.msra.mxu0 %v295
    %1846 = vmatprep.subr.mxu0 0.0
    %1847 = vmatpush1.msra.mxu0 %v296
    %1848 = vmatprep.subr.mxu0 0.0
    %1849 = vmatpush1.msra.mxu0 0.0
    %1850 = vmatprep.subr.mxu0 0.0
    %1851 = vmatpush1.msra.mxu0 0.0
    %1852 = vmatprep.subr.mxu0 0.0
    %1853 = vmatpush1.msra.mxu0 0.0
    %1854 = vmatprep.subr.mxu0 0.0
    %1855 = vmatpush1.msra.mxu0 0.0
    %1856 = vmatprep.subr.mxu0 0.0
    %1857 = vmatpush1.msra.mxu0 0.0
    %1858 = vmatprep.subr.mxu0 0.0
    %1859 = vmatpush1.msra.mxu0 0.0
    %1860 = vmatprep.subr.mxu0 0.0
    %1861 = vmatpush1.msra.mxu0 0.0
    %1862 = vmatprep.subr.mxu0 0.0
    %1863 = vmatpush1.msra.mxu0 0.0
    %1864 = vmatprep.subr.mxu0 0.0
    %1865 = vmatpush1.msra.mxu0 0.0
    %1866 = vmatprep.subr.mxu0 0.0
    %1867 = vmatpush1.msra.mxu0 0.0
    %1868 = vmatprep.subr.mxu0 0.0
    %1869 = vmatpush1.msra.mxu0 0.0
    %1870 = vmatprep.subr.mxu0 0.0
    %1871 = vmatpush1.msra.mxu0 0.0
    %1872 = vmatprep.subr.mxu0 0.0
    %1873 = vmatpush1.msra.mxu0 0.0
    %1874 = vmatprep.subr.mxu0 0.0
    %1875 = vmatpush1.msra.mxu0 0.0
    %1876 = vmatprep.subr.mxu0 0.0
    %1877 = vmatpush1.msra.mxu0 0.0
    %1878 = vmatprep.subr.mxu0 0.0
    %1879 = vmatpush1.msra.mxu0 0.0
    %1880 = vmatprep.subr.mxu0 0.0
    %1881 = vmatpush1.msra.mxu0 0.0
    %1882 = vmatprep.subr.mxu0 0.0
    %1883 = vmatpush1.msra.mxu0 0.0
    %1884 = vmatprep.subr.mxu0 0.0
    %1885 = vmatpush1.msra.mxu0 0.0
    %1886 = vmatprep.subr.mxu0 0.0
    %1887 = vmatpush1.msra.mxu0 0.0
    %1888 = vmatprep.subr.mxu0 0.0
    %1889 = vmatpush1.msra.mxu0 0.0
    %1890 = vmatprep.subr.mxu0 0.0
    %1891 = vmatpush1.msra.mxu0 0.0
    %1892 = vmatprep.subr.mxu0 0.0
    %1893 = vmatpush1.msra.mxu0 0.0
    %1894 = vmatprep.subr.mxu0 0.0
    %1895 = vmatpush1.msra.mxu0 0.0
    %1896 = vmatprep.subr.mxu0 0.0
    %1897 = vmatpush1.msra.mxu0 0.0
    %1898 = vmatprep.subr.mxu0 0.0
    %1899 = vmatpush1.msra.mxu0 0.0
    %1900 = vmatprep.subr.mxu0 0.0
    %1901 = vmatpush1.msra.mxu0 0.0
    %1902 = vmatprep.subr.mxu0 0.0
    %1903 = vmatpush1.msra.mxu0 0.0
    %1904 = vmatprep.mubr.f32.mxu0 0.0
    %1905 = vmatmul.mubr.f32.gmra.mrb[0].mxu0 %v1838
    %v1906 = vpop.f32.mrb[0].mxu0
    %v1907 = vadd.f32 %v1834, %v1906
    %v1908 = vpop.f32.mrb[0].mxu0
    %1909 = vdwg.mxu0
    %v1910 = vtanh.pop %v1907
    %v1912 = vsel %vm310, %v1766, 0
    %1914 = vmatprep.subr.mxu0 0.0
    %1915 = vmatpush1.msra.mxu0 %v297
    %1916 = vmatprep.subr.mxu0 0.0
    %1917 = vmatpush1.msra.mxu0 %v298
    %1918 = vmatprep.subr.mxu0 0.0
    %1919 = vmatpush1.msra.mxu0 %v299
    %1920 = vmatprep.subr.mxu0 0.0
    %1921 = vmatpush1.msra.mxu0 %v300
    %1922 = vmatprep.subr.mxu0 0.0
    %1923 = vmatpush1.msra.mxu0 0.0
    %1924 = vmatprep.subr.mxu0 0.0
    %1925 = vmatpush1.msra.mxu0 0.0
    %1926 = vmatprep.subr.mxu0 0.0
    %1927 = vmatpush1.msra.mxu0 0.0
    %1928 = vmatprep.subr.mxu0 0.0
    %1929 = vmatpush1.msra.mxu0 0.0
    %1930 = vmatprep.subr.mxu0 0.0
    %1931 = vmatpush1.msra.mxu0 0.0
    %1932 = vmatprep.subr.mxu0 0.0
    %1933 = vmatpush1.msra.mxu0 0.0
    %1934 = vmatprep.subr.mxu0 0.0
    %1935 = vmatpush1.msra.mxu0 0.0
    %1936 = vmatprep.subr.mxu0 0.0
    %1937 = vmatpush1.msra.mxu0 0.0
    %1938 = vmatprep.subr.mxu0 0.0
    %1939 = vmatpush1.msra.mxu0 0.0
    %1940 = vmatprep.subr.mxu0 0.0
    %1941 = vmatpush1.msra.mxu0 0.0
    %1942 = vmatprep.subr.mxu0 0.0
    %1943 = vmatpush1.msra.mxu0 0.0
    %1944 = vmatprep.subr.mxu0 0.0
    %1945 = vmatpush1.msra.mxu0 0.0
    %1946 = vmatprep.subr.mxu0 0.0
    %1947 = vmatpush1.msra.mxu0 0.0
    %1948 = vmatprep.subr.mxu0 0.0
    %1949 = vmatpush1.msra.mxu0 0.0
    %1950 = vmatprep.subr.mxu0 0.0
    %1951 = vmatpush1.msra.mxu0 0.0
    %1952 = vmatprep.subr.mxu0 0.0
    %1953 = vmatpush1.msra.mxu0 0.0
    %1954 = vmatprep.subr.mxu0 0.0
    %1955 = vmatpush1.msra.mxu0 0.0
    %1956 = vmatprep.subr.mxu0 0.0
    %1957 = vmatpush1.msra.mxu0 0.0
    %1958 = vmatprep.subr.mxu0 0.0
    %1959 = vmatpush1.msra.mxu0 0.0
    %1960 = vmatprep.subr.mxu0 0.0
    %1961 = vmatpush1.msra.mxu0 0.0
    %1962 = vmatprep.subr.mxu0 0.0
    %1963 = vmatpush1.msra.mxu0 0.0
    %1964 = vmatprep.subr.mxu0 0.0
    %1965 = vmatpush1.msra.mxu0 0.0
    %1966 = vmatprep.subr.mxu0 0.0
    %1967 = vmatpush1.msra.mxu0 0.0
    %1968 = vmatprep.subr.mxu0 0.0
    %1969 = vmatpush1.msra.mxu0 0.0
    %1970 = vmatprep.subr.mxu0 0.0
    %1971 = vmatpush1.msra.mxu0 0.0
    %1972 = vmatprep.subr.mxu0 0.0
    %1973 = vmatpush1.msra.mxu0 0.0
    %1974 = vmatprep.subr.mxu0 0.0
    %1975 = vmatpush1.msra.mxu0 0.0
    %1976 = vmatprep.subr.mxu0 0.0
    %1977 = vmatpush1.msra.mxu0 0.0
    %1978 = vmatprep.mubr.f32.mxu0 0.0
    %1979 = vmatmul.mubr.f32.gmra.mrb[0].mxu0 %v1912
    %v1980 = vpop.f32.mrb[0].mxu0
    %v1981 = vadd.f32 %v306, %v1980
    %v1982 = vpop.f32.mrb[0].mxu0
    %1983 = vdwg.mxu0
    %v1985 = vsel %vm310, %v1910, 0
    %1987 = vmatprep.subr.mxu0 0.0
    %1988 = vmatpush1.msra.mxu0 %v293
    %1989 = vmatprep.subr.mxu0 0.0
    %1990 = vmatpush1.msra.mxu0 %v294
    %1991 = vmatprep.subr.mxu0 0.0
    %1992 = vmatpush1.msra.mxu0 %v295
    %1993 = vmatprep.subr.mxu0 0.0
    %1994 = vmatpush1.msra.mxu0 %v296
    %1995 = vmatprep.subr.mxu0 0.0
    %1996 = vmatpush1.msra.mxu0 0.0
    %1997 = vmatprep.subr.mxu0 0.0
    %1998 = vmatpush1.msra.mxu0 0.0
    %1999 = vmatprep.subr.mxu0 0.0
    %2000 = vmatpush1.msra.mxu0 0.0
    %2001 = vmatprep.subr.mxu0 0.0
    %2002 = vmatpush1.msra.mxu0 0.0
    %2003 = vmatprep.subr.mxu0 0.0
    %2004 = vmatpush1.msra.mxu0 0.0
    %2005 = vmatprep.subr.mxu0 0.0
    %2006 = vmatpush1.msra.mxu0 0.0
    %2007 = vmatprep.subr.mxu0 0.0
    %2008 = vmatpush1.msra.mxu0 0.0
    %2009 = vmatprep.subr.mxu0 0.0
    %2010 = vmatpush1.msra.mxu0 0.0
    %2011 = vmatprep.subr.mxu0 0.0
    %2012 = vmatpush1.msra.mxu0 0.0
    %2013 = vmatprep.subr.mxu0 0.0
    %2014 = vmatpush1.msra.mxu0 0.0
    %2015 = vmatprep.subr.mxu0 0.0
    %2016 = vmatpush1.msra.mxu0 0.0
    %2017 = vmatprep.subr.mxu0 0.0
    %2018 = vmatpush1.msra.mxu0 0.0
    %2019 = vmatprep.subr.mxu0 0.0
    %2020 = vmatpush1.msra.mxu0 0.0
    %2021 = vmatprep.subr.mxu0 0.0
    %2022 = vmatpush1.msra.mxu0 0.0
    %2023 = vmatprep.subr.mxu0 0.0
    %2024 = vmatpush1.msra.mxu0 0.0
    %2025 = vmatprep.subr.mxu0 0.0
    %2026 = vmatpush1.msra.mxu0 0.0
    %2027 = vmatprep.subr.mxu0 0.0
    %2028 = vmatpush1.msra.mxu0 0.0
    %2029 = vmatprep.subr.mxu0 0.0
    %2030 = vmatpush1.msra.mxu0 0.0
    %2031 = vmatprep.subr.mxu0 0.0
    %2032 = vmatpush1.msra.mxu0 0.0
    %2033 = vmatprep.subr.mxu0 0.0
    %2034 = vmatpush1.msra.mxu0 0.0
    %2035 = vmatprep.subr.mxu0 0.0
    %2036 = vmatpush1.msra.mxu0 0.0
    %2037 = vmatprep.subr.mxu0 0.0
    %2038 = vmatpush1.msra.mxu0 0.0
    %2039 = vmatprep.subr.mxu0 0.0
    %2040 = vmatpush1.msra.mxu0 0.0
    %2041 = vmatprep.subr.mxu0 0.0
    %2042 = vmatpush1.msra.mxu0 0.0
    %2043 = vmatprep.subr.mxu0 0.0
    %2044 = vmatpush1.msra.mxu0 0.0
    %2045 = vmatprep.subr.mxu0 0.0
    %2046 = vmatpush1.msra.mxu0 0.0
    %2047 = vmatprep.subr.mxu0 0.0
    %2048 = vmatpush1.msra.mxu0 0.0
    %2049 = vmatprep.subr.mxu0 0.0
    %2050 = vmatpush1.msra.mxu0 0.0
    %2051 = vmatprep.mubr.f32.mxu0 0.0
    %2052 = vmatmul.mubr.f32.gmra.mrb[0].mxu0 %v1985
    %v2053 = vpop.f32.mrb[0].mxu0
    %v2054 = vadd.f32 %v1981, %v2053
    %v2055 = vpop.f32.mrb[0].mxu0
    %2056 = vdwg.mxu0
    %v2057 = vtanh.pop %v2054
    %v2058 = vld [vmem:[%s8] sm:$0xff]
    %v2059 = vld [vmem:[%s8 + $0x8] sm:$0xff]
    %v2060 = vld [vmem:[%s8 + $0x10] sm:$0xff]
    %v2061 = vld [vmem:[%s8 + $0x18] sm:$0xff]
    %v2062 = vld [vmem:[%s9] sm:$0x1]
    %v2064 = vlaneseq
    %v2065 = vshrl.u32 %v2064, 7
    %v2066 = vsub.s32 0, %v2065
    %v2067 = vrot.slane %v2062, %v2066
    %v2070 = vsel %vm310, %v2057, 0
    %2072 = vmatprep.subr.mxu0 0.0
    %2073 = vmatpush1.msra.mxu0 %v2058
    %2074 = vmatprep.subr.mxu0 0.0
    %2075 = vmatpush1.msra.mxu0 %v2059
    %2076 = vmatprep.subr.mxu0 0.0
    %2077 = vmatpush1.msra.mxu0 %v2060
    %2078 = vmatprep.subr.mxu0 0.0
    %2079 = vmatpush1.msra.mxu0 %v2061
    %2080 = vmatprep.subr.mxu0 0.0
    %2081 = vmatpush1.msra.mxu0 0.0
    %2082 = vmatprep.subr.mxu0 0.0
    %2083 = vmatpush1.msra.mxu0 0.0
    %2084 = vmatprep.subr.mxu0 0.0
    %2085 = vmatpush1.msra.mxu0 0.0
    %2086 = vmatprep.subr.mxu0 0.0
    %2087 = vmatpush1.msra.mxu0 0.0
    %2088 = vmatprep.subr.mxu0 0.0
    %2089 = vmatpush1.msra.mxu0 0.0
    %2090 = vmatprep.subr.mxu0 0.0
    %2091 = vmatpush1.msra.mxu0 0.0
    %2092 = vmatprep.subr.mxu0 0.0
    %2093 = vmatpush1.msra.mxu0 0.0
    %2094 = vmatprep.subr.mxu0 0.0
    %2095 = vmatpush1.msra.mxu0 0.0
    %2096 = vmatprep.subr.mxu0 0.0
    %2097 = vmatpush1.msra.mxu0 0.0
    %2098 = vmatprep.subr.mxu0 0.0
    %2099 = vmatpush1.msra.mxu0 0.0
    %2100 = vmatprep.subr.mxu0 0.0
    %2101 = vmatpush1.msra.mxu0 0.0
    %2102 = vmatprep.subr.mxu0 0.0
    %2103 = vmatpush1.msra.mxu0 0.0
    %2104 = vmatprep.subr.mxu0 0.0
    %2105 = vmatpush1.msra.mxu0 0.0
    %2106 = vmatprep.subr.mxu0 0.0
    %2107 = vmatpush1.msra.mxu0 0.0
    %2108 = vmatprep.subr.mxu0 0.0
    %2109 = vmatpush1.msra.mxu0 0.0
    %2110 = vmatprep.subr.mxu0 0.0
    %2111 = vmatpush1.msra.mxu0 0.0
    %2112 = vmatprep.subr.mxu0 0.0
    %2113 = vmatpush1.msra.mxu0 0.0
    %2114 = vmatprep.subr.mxu0 0.0
    %2115 = vmatpush1.msra.mxu0 0.0
    %2116 = vmatprep.subr.mxu0 0.0
    %2117 = vmatpush1.msra.mxu0 0.0
    %2118 = vmatprep.subr.mxu0 0.0
    %2119 = vmatpush1.msra.mxu0 0.0
    %2120 = vmatprep.subr.mxu0 0.0
    %2121 = vmatpush1.msra.mxu0 0.0
    %2122 = vmatprep.subr.mxu0 0.0
    %2123 = vmatpush1.msra.mxu0 0.0
    %2124 = vmatprep.subr.mxu0 0.0
    %2125 = vmatpush1.msra.mxu0 0.0
    %2126 = vmatprep.subr.mxu0 0.0
    %2127 = vmatpush1.msra.mxu0 0.0
    %2128 = vmatprep.subr.mxu0 0.0
    %2129 = vmatpush1.msra.mxu0 0.0
    %2130 = vmatprep.subr.mxu0 0.0
    %2131 = vmatpush1.msra.mxu0 0.0
    %2132 = vmatprep.subr.mxu0 0.0
    %2133 = vmatpush1.msra.mxu0 0.0
    %2134 = vmatprep.subr.mxu0 0.0
    %2135 = vmatpush1.msra.mxu0 0.0
    %2136 = vmatprep.mubr.f32.mxu0 0.0
    %2137 = vmatmul.mubr.f32.gmra.mrb[0].mxu0 %v2070
    %v2138 = vpop.f32.mrb[0].mxu0
    %v2139 = vadd.f32 %v2067, %v2138
    %v2140 = vpop.f32.mrb[0].mxu0
    %2141 = vdwg.mxu0
    %v2142 = vld [vmem:[%s10] sm:$0xff]
    %v2143 = vld [vmem:[%s10 + $0x8] sm:$0xff]
    %v2144 = vld [vmem:[%s10 + $0x10] sm:$0xff]
    %v2145 = vld [vmem:[%s10 + $0x18] sm:$0xff]
    %v2146 = vld [vmem:[%s11] sm:$0x1]
    %v2148 = vlaneseq
    %v2149 = vshrl.u32 %v2148, 7
    %v2150 = vsub.s32 0, %v2149
    %v2151 = vrot.slane %v2146, %v2150
    %v2154 = vsel %vm310, %v2139, 0
    %2156 = vmatprep.subr.mxu0 0.0
    %2157 = vmatpush1.msra.mxu0 %v2142
    %2158 = vmatprep.subr.mxu0 0.0
    %2159 = vmatpush1.msra.mxu0 %v2143
    %2160 = vmatprep.subr.mxu0 0.0
    %2161 = vmatpush1.msra.mxu0 %v2144
    %2162 = vmatprep.subr.mxu0 0.0
    %2163 = vmatpush1.msra.mxu0 %v2145
    %2164 = vmatprep.subr.mxu0 0.0
    %2165 = vmatpush1.msra.mxu0 0.0
    %2166 = vmatprep.subr.mxu0 0.0
    %2167 = vmatpush1.msra.mxu0 0.0
    %2168 = vmatprep.subr.mxu0 0.0
    %2169 = vmatpush1.msra.mxu0 0.0
    %2170 = vmatprep.subr.mxu0 0.0
    %2171 = vmatpush1.msra.mxu0 0.0
    %2172 = vmatprep.subr.mxu0 0.0
    %2173 = vmatpush1.msra.mxu0 0.0
    %2174 = vmatprep.subr.mxu0 0.0
    %2175 = vmatpush1.msra.mxu0 0.0
    %2176 = vmatprep.subr.mxu0 0.0
    %2177 = vmatpush1.msra.mxu0 0.0
    %2178 = vmatprep.subr.mxu0 0.0
    %2179 = vmatpush1.msra.mxu0 0.0
    %2180 = vmatprep.subr.mxu0 0.0
    %2181 = vmatpush1.msra.mxu0 0.0
    %2182 = vmatprep.subr.mxu0 0.0
    %2183 = vmatpush1.msra.mxu0 0.0
    %2184 = vmatprep.subr.mxu0 0.0
    %2185 = vmatpush1.msra.mxu0 0.0
    %2186 = vmatprep.subr.mxu0 0.0
    %2187 = vmatpush1.msra.mxu0 0.0
    %2188 = vmatprep.subr.mxu0 0.0
    %2189 = vmatpush1.msra.mxu0 0.0
    %2190 = vmatprep.subr.mxu0 0.0
    %2191 = vmatpush1.msra.mxu0 0.0
    %2192 = vmatprep.subr.mxu0 0.0
    %2193 = vmatpush1.msra.mxu0 0.0
    %2194 = vmatprep.subr.mxu0 0.0
    %2195 = vmatpush1.msra.mxu0 0.0
    %2196 = vmatprep.subr.mxu0 0.0
    %2197 = vmatpush1.msra.mxu0 0.0
    %2198 = vmatprep.subr.mxu0 0.0
    %2199 = vmatpush1.msra.mxu0 0.0
    %2200 = vmatprep.subr.mxu0 0.0
    %2201 = vmatpush1.msra.mxu0 0.0
    %2202 = vmatprep.subr.mxu0 0.0
    %2203 = vmatpush1.msra.mxu0 0.0
    %2204 = vmatprep.subr.mxu0 0.0
    %2205 = vmatpush1.msra.mxu0 0.0
    %2206 = vmatprep.subr.mxu0 0.0
    %2207 = vmatpush1.msra.mxu0 0.0
    %2208 = vmatprep.subr.mxu0 0.0
    %2209 = vmatpush1.msra.mxu0 0.0
    %2210 = vmatprep.subr.mxu0 0.0
    %2211 = vmatpush1.msra.mxu0 0.0
    %2212 = vmatprep.subr.mxu0 0.0
    %2213 = vmatpush1.msra.mxu0 0.0
    %2214 = vmatprep.subr.mxu0 0.0
    %2215 = vmatpush1.msra.mxu0 0.0
    %2216 = vmatprep.subr.mxu0 0.0
    %2217 = vmatpush1.msra.mxu0 0.0
    %2218 = vmatprep.subr.mxu0 0.0
    %2219 = vmatpush1.msra.mxu0 0.0
    %2220 = vmatprep.mubr.f32.mxu0 0.0
    %2221 = vmatmul.mubr.f32.gmra.mrb[0].mxu0 %v2154
    %v2222 = vpop.f32.mrb[0].mxu0
    %v2223 = vadd.f32 %v2151, %v2222
    %v2224 = vpop.f32.mrb[0].mxu0
    %2225 = vdwg.mxu0
    %v2226 = vmax.f32 %v2223, 0.0
    %v2227 = vld [vmem:[#allocation8] sm:$0xff]
    %v2228 = vld [vmem:[#allocation8 + $0x8] sm:$0xff]
    %v2229 = vld [vmem:[%s13] sm:$0x1]
    %v2231 = vlaneseq
    %v2232 = vshrl.u32 %v2231, 7
    %v2233 = vsub.s32 0, %v2232
    %v2234 = vrot.slane %v2229, %v2233
    %v2237 = vsel %vm159, %v2226, 0
    %2239 = vmatprep.subr.mxu0 0.0
    %2240 = vmatpush1.msra.mxu0 %v2227
    %2241 = vmatprep.subr.mxu0 0.0
    %2242 = vmatpush1.msra.mxu0 %v2228
    %2243 = vmatprep.subr.mxu0 0.0
    %2244 = vmatpush1.msra.mxu0 0.0
    %2245 = vmatprep.subr.mxu0 0.0
    %2246 = vmatpush1.msra.mxu0 0.0
    %2247 = vmatprep.subr.mxu0 0.0
    %2248 = vmatpush1.msra.mxu0 0.0
    %2249 = vmatprep.subr.mxu0 0.0
    %2250 = vmatpush1.msra.mxu0 0.0
    %2251 = vmatprep.subr.mxu0 0.0
    %2252 = vmatpush1.msra.mxu0 0.0
    %2253 = vmatprep.subr.mxu0 0.0
    %2254 = vmatpush1.msra.mxu0 0.0
    %2255 = vmatprep.subr.mxu0 0.0
    %2256 = vmatpush1.msra.mxu0 0.0
    %2257 = vmatprep.subr.mxu0 0.0
    %2258 = vmatpush1.msra.mxu0 0.0
    %2259 = vmatprep.subr.mxu0 0.0
    %2260 = vmatpush1.msra.mxu0 0.0
    %2261 = vmatprep.subr.mxu0 0.0
    %2262 = vmatpush1.msra.mxu0 0.0
    %2263 = vmatprep.subr.mxu0 0.0
    %2264 = vmatpush1.msra.mxu0 0.0
    %2265 = vmatprep.subr.mxu0 0.0
    %2266 = vmatpush1.msra.mxu0 0.0
    %2267 = vmatprep.subr.mxu0 0.0
    %2268 = vmatpush1.msra.mxu0 0.0
    %2269 = vmatprep.subr.mxu0 0.0
    %2270 = vmatpush1.msra.mxu0 0.0
    %2271 = vmatprep.subr.mxu0 0.0
    %2272 = vmatpush1.msra.mxu0 0.0
    %2273 = vmatprep.subr.mxu0 0.0
    %2274 = vmatpush1.msra.mxu0 0.0
    %2275 = vmatprep.subr.mxu0 0.0
    %2276 = vmatpush1.msra.mxu0 0.0
    %2277 = vmatprep.subr.mxu0 0.0
    %2278 = vmatpush1.msra.mxu0 0.0
    %2279 = vmatprep.subr.mxu0 0.0
    %2280 = vmatpush1.msra.mxu0 0.0
    %2281 = vmatprep.subr.mxu0 0.0
    %2282 = vmatpush1.msra.mxu0 0.0
    %2283 = vmatprep.subr.mxu0 0.0
    %2284 = vmatpush1.msra.mxu0 0.0
    %2285 = vmatprep.subr.mxu0 0.0
    %2286 = vmatpush1.msra.mxu0 0.0
    %2287 = vmatprep.subr.mxu0 0.0
    %2288 = vmatpush1.msra.mxu0 0.0
    %2289 = vmatprep.subr.mxu0 0.0
    %2290 = vmatpush1.msra.mxu0 0.0
    %2291 = vmatprep.subr.mxu0 0.0
    %2292 = vmatpush1.msra.mxu0 0.0
    %2293 = vmatprep.subr.mxu0 0.0
    %2294 = vmatpush1.msra.mxu0 0.0
    %2295 = vmatprep.subr.mxu0 0.0
    %2296 = vmatpush1.msra.mxu0 0.0
    %2297 = vmatprep.subr.mxu0 0.0
    %2298 = vmatpush1.msra.mxu0 0.0
    %2299 = vmatprep.subr.mxu0 0.0
    %2300 = vmatpush1.msra.mxu0 0.0
    %2301 = vmatprep.subr.mxu0 0.0
    %2302 = vmatpush1.msra.mxu0 0.0
    %2303 = vmatprep.mubr.f32.mxu0 0.0
    %2304 = vmatmul.mubr.f32.gmra.mrb[0].mxu0 %v2237
    %v2305 = vpop.f32.mrb[0].mxu0
    %v2306 = vadd.f32 %v2234, %v2305
    %v2307 = vpop.f32.mrb[0].mxu0
    %2308 = vdwg.mxu0
    %2309 = vst [vmem:[#allocation10] sm:$0xff] %v2306
    // Predicated region
    $region74: #{tpu_custom_call.1} parent=1 // pred_check
      _
    $region75: #{tpu_custom_call.1} parent=1 // pred_check_branch
      %2311 = sbr.rel (0) target = $region77
    $region76: #{tpu_custom_call.1} parent=1 // pred_region
      %s2313 = ssub.s32 128, 128
      %2314 = vsyncadd [#allocation4], %s2313
      %s2316 = sshll.u32 [#allocation10], 4
      %s2317 = int_to_ptr.vmem [resolvable:$true] %s2316
      %2319 = dma.vmem_to_hbm [thread:$0]  %s2317, 128, %s14, [#allocation4]
    $region77: #{tpu_custom_call.1} parent=1 // pred_fallthru
      _
    // Predicated region
    $region78: #{tpu_custom_call.1} parent=1 // pred_check
      _
    $region79: #{tpu_custom_call.1} parent=1 // pred_check_branch
      %2321 = sbr.rel (0) target = $region81
    $region80: #{tpu_custom_call.1} parent=1 // pred_region
      %2322 = dma.done [#allocation4], 128
    $region81: #{tpu_custom_call.1} parent=1 // pred_fallthru
      _
    %2323 = vsyncpa [#allocation3], 1
    %2324 = vsyncpa [#allocation6], 1
    %2325 = vsyncpa [#allocation9], 1
    %2326 = vsyncpa [#allocation4], 1

</llo_original>
